<compile_context>
chip_gen: v5e
topology: v5e:2x2
jax: 0.10.0
libtpu: 0.0.40
codegen_flags: <defaults>
</compile_context>

<pallas_src>
import jax
import jax.numpy as jnp
import numpy as np
from jax import lax
from jax.experimental import pallas as pl
from jax.experimental.pallas import tpu as pltpu


def gru_ln_kernel(x_ref, wih_ref, whh_ref, bi_ref, bhn_ref, gamma_ref, beta_ref, out_ref):
    B, S, H = x_ref.shape

    x = x_ref[...].astype(jnp.float32)                    # (B, S, H)
    xf = x.reshape(B * S, H)                              # (B*S, H) — tiled-layout no-op

    # ---- hoisted input projections (independent of h, off the serial chain) ----
    # bi_ref[0] = b_ir + b_hr, bi_ref[1] = b_iz + b_hz, bi_ref[2] = b_in
    gi_r = (jnp.dot(xf, wih_ref[0], preferred_element_type=jnp.float32)
            + bi_ref[0]).reshape(B, S, H)
    gi_z = (jnp.dot(xf, wih_ref[1], preferred_element_type=jnp.float32)
            + bi_ref[1]).reshape(B, S, H)
    gi_n = (jnp.dot(xf, wih_ref[2], preferred_element_type=jnp.float32)
            + bi_ref[2]).reshape(B, S, H)

    w_hr = whh_ref[0]                                     # (H, H) = W_hr^T
    w_hz = whh_ref[1]
    w_hn = whh_ref[2]
    b_hn = bhn_ref[...]                                   # (1, H)

    # ---- serial recurrence: fully unrolled, h carried in registers --------------
    # The loop body only computes h_t; residual + LayerNorm are deferred so the
    # per-iteration critical chain is just 3 small MXU dots + gate VPU/EUP ops.
    h = jnp.zeros((B, H), jnp.float32)
    for t in range(S):
        gh_r = jnp.dot(h, w_hr, preferred_element_type=jnp.float32)
        gh_z = jnp.dot(h, w_hz, preferred_element_type=jnp.float32)
        gh_n = jnp.dot(h, w_hn, preferred_element_type=jnp.float32) + b_hn

        r = jax.nn.sigmoid(gi_r[:, t, :] + gh_r)
        z = jax.nn.sigmoid(gi_z[:, t, :] + gh_z)
        n = jnp.tanh(gi_n[:, t, :] + r * gh_n)
        h = (1.0 - z) * n + z * h

        # Stage pre-LayerNorm residual in the VMEM output tile (store is off the
        # serial chain; h_{t+1} does not depend on it).
        out_ref[:, t, :] = (h + x[:, t, :]).astype(out_ref.dtype)

    # ---- residual + LayerNorm(eps=1e-12), batched over all B*S rows -------------
    y = out_ref[...].astype(jnp.float32)                  # (B, S, H), staged above
    mu = jnp.mean(y, axis=-1, keepdims=True)
    var = jnp.mean((y - mu) ** 2, axis=-1, keepdims=True)
    y = (y - mu) * lax.rsqrt(var + 1e-12)
    y = y * gamma_ref[...] + beta_ref[...]                # (1, H) broadcasts over (B, S, H)
    out_ref[...] = y.astype(out_ref.dtype)                # single full-tile store


def gru_layer_forward(x, w_ih, w_hh, b_ih, b_hh, gamma, beta, attention_mask=None):
    """x: (B, S, H) batch_first (PyTorch convention). Returns (B, S, H).

    attention_mask is accepted for CananicalBlock-signature parity but is unused
    by the GRU branch (as in the PyTorch module).
    """
    del attention_mask
    B, S, H = x.shape

    # Per-gate weights on a leading axis, pre-transposed so the kernel does x @ W.
    w_ih_t = jnp.transpose(w_ih.reshape(3, H, H), (0, 2, 1)).astype(jnp.float32)  # (3, H, H)
    w_hh_t = jnp.transpose(w_hh.reshape(3, H, H), (0, 2, 1)).astype(jnp.float32)  # (3, H, H)

    b_ih3 = b_ih.reshape(3, 1, H).astype(jnp.float32)
    b_hh3 = b_hh.reshape(3, 1, H).astype(jnp.float32)
    # Fuse r/z biases (b_i + b_h) into the precomputed input projection; keep only
    # b_in for the n gate here — b_hn must stay inside r * (gh_n + b_hn).
    b_i = jnp.concatenate([b_ih3[:2] + b_hh3[:2], b_ih3[2:3]], axis=0)            # (3, 1, H)
    b_hn = b_hh3[2]                                                               # (1, H)

    gamma2 = gamma.reshape(1, H).astype(jnp.float32)
    beta2 = beta.reshape(1, H).astype(jnp.float32)

    vmem = pl.BlockSpec(memory_space=pltpu.MemorySpace.VMEM)
    return pl.pallas_call(
        gru_ln_kernel,
        out_shape=jax.ShapeDtypeStruct((B, S, H), x.dtype),
        in_specs=[vmem] * 7,
        out_specs=vmem,
    )(x, w_ih_t, w_hh_t, b_i, b_hn, gamma2, beta2)


def gru_layer_reference(x, w_ih, w_hh, b_ih, b_hh, gamma, beta):
    """Pure-JAX reference for correctness checking."""
    B, S, H = x.shape

    def step(h, x_t):
        gi = x_t @ w_ih.T + b_ih
        gh = h @ w_hh.T + b_hh
        r = jax.nn.sigmoid(gi[:, :H] + gh[:, :H])
        z = jax.nn.sigmoid(gi[:, H:2 * H] + gh[:, H:2 * H])
        n = jnp.tanh(gi[:, 2 * H:] + r * gh[:, 2 * H:])
        h_new = (1.0 - z) * n + z * h
        return h_new, h_new

    _, hs = lax.scan(step, jnp.zeros((B, H), jnp.float32), jnp.transpose(x, (1, 0, 2)))
    y = jnp.transpose(hs, (1, 0, 2)) + x
    mu = jnp.mean(y, axis=-1, keepdims=True)
    var = jnp.mean((y - mu) ** 2, axis=-1, keepdims=True)
    return (y - mu) / jnp.sqrt(var + 1e-12) * gamma + beta


if __name__ == "__main__":
    # args: model_name='GRU', hidden_size=32, num_rnn_layers=1, use_bidirect=0,
    #       use_layernorm=1; dropout is identity at inference. attention_mask is
    #       unused by the GRU branch of CananicalBlock.
    B, S, H = 2, 8, 32

    key = jax.random.PRNGKey(0)
    k_x, k_wih, k_whh, k_bih, k_bhh = jax.random.split(key, 5)

    x = jax.random.normal(k_x, (B, S, H), dtype=jnp.float32)

    # nn.GRU-style U(-1/sqrt(H), 1/sqrt(H)) parameter shapes.
    bound = 1.0 / np.sqrt(H)
    w_ih = jax.random.uniform(k_wih, (3 * H, H), minval=-bound, maxval=bound, dtype=jnp.float32)
    w_hh = jax.random.uniform(k_whh, (3 * H, H), minval=-bound, maxval=bound, dtype=jnp.float32)
    b_ih = jax.random.uniform(k_bih, (3 * H,), minval=-bound, maxval=bound, dtype=jnp.float32)
    b_hh = jax.random.uniform(k_bhh, (3 * H,), minval=-bound, maxval=bound, dtype=jnp.float32)
    gamma = jnp.ones((H,), jnp.float32)   # nn.LayerNorm default init
    beta = jnp.zeros((H,), jnp.float32)

    out = jax.block_until_ready(gru_layer_forward(x, w_ih, w_hh, b_ih, b_hh, gamma, beta))
    ref = jax.block_until_ready(gru_layer_reference(x, w_ih, w_hh, b_ih, b_hh, gamma, beta))
    np.testing.assert_allclose(np.asarray(out), np.asarray(ref), rtol=1e-4, atol=1e-4)

    print("KERNEL_OK")
</pallas_src>

<mosaic_0001>
module attributes {stable_mosaic.version = 11 : i64} {
  func.func @gru_ln_kernel(%arg0: memref<2x8x32xf32, #tpu.memory_space<vmem>>, %arg1: memref<3x32x32xf32, #tpu.memory_space<vmem>>, %arg2: memref<3x32x32xf32, #tpu.memory_space<vmem>>, %arg3: memref<3x1x32xf32, #tpu.memory_space<vmem>>, %arg4: memref<1x32xf32, #tpu.memory_space<vmem>>, %arg5: memref<1x32xf32, #tpu.memory_space<vmem>>, %arg6: memref<1x32xf32, #tpu.memory_space<vmem>>, %arg7: memref<2x8x32xf32, #tpu.memory_space<vmem>>) attributes {dimension_semantics = [], scalar_prefetch = 0 : i64, scratch_operands = 0 : i64, tpu.core_type = #tpu.core_type<tc>} {
    %c0 = arith.constant 0 : index
    %c0_0 = arith.constant 0 : index
    %c0_1 = arith.constant 0 : index
    %0 = vector.load %arg0[%c0, %c0_0, %c0_1] : memref<2x8x32xf32, #tpu.memory_space<vmem>>, vector<2x8x32xf32>
    %1 = vector.shape_cast %0 : vector<2x8x32xf32> to vector<16x32xf32>
    %c0_2 = arith.constant 0 : index
    %c0_3 = arith.constant 0 : index
    %c0_4 = arith.constant 0 : index
    %2 = vector.load %arg1[%c0_2, %c0_3, %c0_4] : memref<3x32x32xf32, #tpu.memory_space<vmem>>, vector<1x32x32xf32>
    %3 = vector.shape_cast %2 : vector<1x32x32xf32> to vector<32x32xf32>
    %cst = arith.constant dense<0.000000e+00> : vector<16x32xf32>
    %4 = tpu.matmul %1, %3, %cst {dimension_numbers = #tpu.dot_dimension_numbers<[1], [0], [0], [1], [0, 0, 1, 1], [], []>} : vector<16x32xf32>, vector<32x32xf32>, vector<16x32xf32> -> vector<16x32xf32>
    %c0_5 = arith.constant 0 : index
    %c0_6 = arith.constant 0 : index
    %c0_7 = arith.constant 0 : index
    %5 = vector.load %arg3[%c0_5, %c0_6, %c0_7] : memref<3x1x32xf32, #tpu.memory_space<vmem>>, vector<1x1x32xf32>
    %6 = vector.shape_cast %5 : vector<1x1x32xf32> to vector<1x32xf32>
    %7 = vector.broadcast %6 : vector<1x32xf32> to vector<16x32xf32>
    %8 = arith.addf %4, %7 : vector<16x32xf32>
    %9 = vector.shape_cast %8 : vector<16x32xf32> to vector<2x8x32xf32>
    %c1 = arith.constant 1 : index
    %c0_8 = arith.constant 0 : index
    %c0_9 = arith.constant 0 : index
    %10 = vector.load %arg1[%c1, %c0_8, %c0_9] : memref<3x32x32xf32, #tpu.memory_space<vmem>>, vector<1x32x32xf32>
    %11 = vector.shape_cast %10 : vector<1x32x32xf32> to vector<32x32xf32>
    %cst_10 = arith.constant dense<0.000000e+00> : vector<16x32xf32>
    %12 = tpu.matmul %1, %11, %cst_10 {dimension_numbers = #tpu.dot_dimension_numbers<[1], [0], [0], [1], [0, 0, 1, 1], [], []>} : vector<16x32xf32>, vector<32x32xf32>, vector<16x32xf32> -> vector<16x32xf32>
    %c1_11 = arith.constant 1 : index
    %c0_12 = arith.constant 0 : index
    %c0_13 = arith.constant 0 : index
    %13 = vector.load %arg3[%c1_11, %c0_12, %c0_13] : memref<3x1x32xf32, #tpu.memory_space<vmem>>, vector<1x1x32xf32>
    %14 = vector.shape_cast %13 : vector<1x1x32xf32> to vector<1x32xf32>
    %15 = vector.broadcast %14 : vector<1x32xf32> to vector<16x32xf32>
    %16 = arith.addf %12, %15 : vector<16x32xf32>
    %17 = vector.shape_cast %16 : vector<16x32xf32> to vector<2x8x32xf32>
    %c2 = arith.constant 2 : index
    %c0_14 = arith.constant 0 : index
    %c0_15 = arith.constant 0 : index
    %18 = vector.load %arg1[%c2, %c0_14, %c0_15] : memref<3x32x32xf32, #tpu.memory_space<vmem>>, vector<1x32x32xf32>
    %19 = vector.shape_cast %18 : vector<1x32x32xf32> to vector<32x32xf32>
    %cst_16 = arith.constant dense<0.000000e+00> : vector<16x32xf32>
    %20 = tpu.matmul %1, %19, %cst_16 {dimension_numbers = #tpu.dot_dimension_numbers<[1], [0], [0], [1], [0, 0, 1, 1], [], []>} : vector<16x32xf32>, vector<32x32xf32>, vector<16x32xf32> -> vector<16x32xf32>
    %c2_17 = arith.constant 2 : index
    %c0_18 = arith.constant 0 : index
    %c0_19 = arith.constant 0 : index
    %21 = vector.load %arg3[%c2_17, %c0_18, %c0_19] : memref<3x1x32xf32, #tpu.memory_space<vmem>>, vector<1x1x32xf32>
    %22 = vector.shape_cast %21 : vector<1x1x32xf32> to vector<1x32xf32>
    %23 = vector.broadcast %22 : vector<1x32xf32> to vector<16x32xf32>
    %24 = arith.addf %20, %23 : vector<16x32xf32>
    %25 = vector.shape_cast %24 : vector<16x32xf32> to vector<2x8x32xf32>
    %c0_20 = arith.constant 0 : index
    %c0_21 = arith.constant 0 : index
    %c0_22 = arith.constant 0 : index
    %26 = vector.load %arg2[%c0_20, %c0_21, %c0_22] : memref<3x32x32xf32, #tpu.memory_space<vmem>>, vector<1x32x32xf32>
    %27 = vector.shape_cast %26 : vector<1x32x32xf32> to vector<32x32xf32>
    %c1_23 = arith.constant 1 : index
    %c0_24 = arith.constant 0 : index
    %c0_25 = arith.constant 0 : index
    %28 = vector.load %arg2[%c1_23, %c0_24, %c0_25] : memref<3x32x32xf32, #tpu.memory_space<vmem>>, vector<1x32x32xf32>
    %29 = vector.shape_cast %28 : vector<1x32x32xf32> to vector<32x32xf32>
    %c2_26 = arith.constant 2 : index
    %c0_27 = arith.constant 0 : index
    %c0_28 = arith.constant 0 : index
    %30 = vector.load %arg2[%c2_26, %c0_27, %c0_28] : memref<3x32x32xf32, #tpu.memory_space<vmem>>, vector<1x32x32xf32>
    %31 = vector.shape_cast %30 : vector<1x32x32xf32> to vector<32x32xf32>
    %c0_29 = arith.constant 0 : index
    %c0_30 = arith.constant 0 : index
    %32 = vector.load %arg4[%c0_29, %c0_30] : memref<1x32xf32, #tpu.memory_space<vmem>>, vector<1x32xf32>
    %cst_31 = arith.constant 0.000000e+00 : f32
    %33 = vector.broadcast %cst_31 : f32 to vector<2x32xf32>
    %cst_32 = arith.constant dense<0.000000e+00> : vector<2x32xf32>
    %34 = tpu.matmul %33, %27, %cst_32 {dimension_numbers = #tpu.dot_dimension_numbers<[1], [0], [0], [1], [0, 0, 1, 1], [], []>} : vector<2x32xf32>, vector<32x32xf32>, vector<2x32xf32> -> vector<2x32xf32>
    %cst_33 = arith.constant dense<0.000000e+00> : vector<2x32xf32>
    %35 = tpu.matmul %33, %29, %cst_33 {dimension_numbers = #tpu.dot_dimension_numbers<[1], [0], [0], [1], [0, 0, 1, 1], [], []>} : vector<2x32xf32>, vector<32x32xf32>, vector<2x32xf32> -> vector<2x32xf32>
    %cst_34 = arith.constant dense<0.000000e+00> : vector<2x32xf32>
    %36 = tpu.matmul %33, %31, %cst_34 {dimension_numbers = #tpu.dot_dimension_numbers<[1], [0], [0], [1], [0, 0, 1, 1], [], []>} : vector<2x32xf32>, vector<32x32xf32>, vector<2x32xf32> -> vector<2x32xf32>
    %37 = vector.broadcast %32 : vector<1x32xf32> to vector<2x32xf32>
    %38 = arith.addf %36, %37 : vector<2x32xf32>
    %39 = vector.extract_strided_slice %9 {offsets = [0, 0, 0], sizes = [2, 1, 32], strides = [1, 1, 1]} : vector<2x8x32xf32> to vector<2x1x32xf32>
    %40 = vector.shape_cast %39 : vector<2x1x32xf32> to vector<2x32xf32>
    %41 = arith.addf %40, %34 : vector<2x32xf32>
    %42 = arith.negf %41 : vector<2x32xf32>
    %43 = math.exp %42 : vector<2x32xf32>
    %cst_35 = arith.constant 1.000000e+00 : f32
    %44 = vector.broadcast %cst_35 : f32 to vector<2x32xf32>
    %45 = arith.addf %44, %43 : vector<2x32xf32>
    %46 = arith.divf %44, %45 : vector<2x32xf32>
    %47 = vector.extract_strided_slice %17 {offsets = [0, 0, 0], sizes = [2, 1, 32], strides = [1, 1, 1]} : vector<2x8x32xf32> to vector<2x1x32xf32>
    %48 = vector.shape_cast %47 : vector<2x1x32xf32> to vector<2x32xf32>
    %49 = arith.addf %48, %35 : vector<2x32xf32>
    %50 = arith.negf %49 : vector<2x32xf32>
    %51 = math.exp %50 : vector<2x32xf32>
    %cst_36 = arith.constant 1.000000e+00 : f32
    %52 = vector.broadcast %cst_36 : f32 to vector<2x32xf32>
    %53 = arith.addf %52, %51 : vector<2x32xf32>
    %54 = arith.divf %52, %53 : vector<2x32xf32>
    %55 = vector.extract_strided_slice %25 {offsets = [0, 0, 0], sizes = [2, 1, 32], strides = [1, 1, 1]} : vector<2x8x32xf32> to vector<2x1x32xf32>
    %56 = vector.shape_cast %55 : vector<2x1x32xf32> to vector<2x32xf32>
    %57 = arith.mulf %46, %38 : vector<2x32xf32>
    %58 = arith.addf %56, %57 : vector<2x32xf32>
    %59 = math.tanh %58 : vector<2x32xf32>
    %cst_37 = arith.constant 1.000000e+00 : f32
    %60 = vector.broadcast %cst_37 : f32 to vector<2x32xf32>
    %61 = arith.subf %60, %54 : vector<2x32xf32>
    %62 = arith.mulf %61, %59 : vector<2x32xf32>
    %63 = arith.mulf %54, %33 : vector<2x32xf32>
    %64 = arith.addf %62, %63 : vector<2x32xf32>
    %65 = vector.extract_strided_slice %0 {offsets = [0, 0, 0], sizes = [2, 1, 32], strides = [1, 1, 1]} : vector<2x8x32xf32> to vector<2x1x32xf32>
    %66 = vector.shape_cast %65 : vector<2x1x32xf32> to vector<2x32xf32>
    %67 = arith.addf %64, %66 : vector<2x32xf32>
    %c0_38 = arith.constant 0 : index
    %c0_39 = arith.constant 0 : index
    %c0_40 = arith.constant 0 : index
    %68 = vector.load %arg7[%c0_38, %c0_39, %c0_40] : memref<2x8x32xf32, #tpu.memory_space<vmem>>, vector<2x1x32xf32>
    %69 = vector.shape_cast %68 : vector<2x1x32xf32> to vector<2x32xf32>
    %70 = vector.shape_cast %67 : vector<2x32xf32> to vector<2x1x32xf32>
    tpu.vector_store %arg7[%c0_38, %c0_39, %c0_40], %70 {strides = array<i32>} : memref<2x8x32xf32, #tpu.memory_space<vmem>>, vector<2x1x32xf32>,
    %cst_41 = arith.constant dense<0.000000e+00> : vector<2x32xf32>
    %71 = tpu.matmul %64, %27, %cst_41 {dimension_numbers = #tpu.dot_dimension_numbers<[1], [0], [0], [1], [0, 0, 1, 1], [], []>} : vector<2x32xf32>, vector<32x32xf32>, vector<2x32xf32> -> vector<2x32xf32>
    %cst_42 = arith.constant dense<0.000000e+00> : vector<2x32xf32>
    %72 = tpu.matmul %64, %29, %cst_42 {dimension_numbers = #tpu.dot_dimension_numbers<[1], [0], [0], [1], [0, 0, 1, 1], [], []>} : vector<2x32xf32>, vector<32x32xf32>, vector<2x32xf32> -> vector<2x32xf32>
    %cst_43 = arith.constant dense<0.000000e+00> : vector<2x32xf32>
    %73 = tpu.matmul %64, %31, %cst_43 {dimension_numbers = #tpu.dot_dimension_numbers<[1], [0], [0], [1], [0, 0, 1, 1], [], []>} : vector<2x32xf32>, vector<32x32xf32>, vector<2x32xf32> -> vector<2x32xf32>
    %74 = vector.broadcast %32 : vector<1x32xf32> to vector<2x32xf32>
    %75 = arith.addf %73, %74 : vector<2x32xf32>
    %76 = vector.extract_strided_slice %9 {offsets = [0, 1, 0], sizes = [2, 1, 32], strides = [1, 1, 1]} : vector<2x8x32xf32> to vector<2x1x32xf32>
    %77 = vector.shape_cast %76 : vector<2x1x32xf32> to vector<2x32xf32>
    %78 = arith.addf %77, %71 : vector<2x32xf32>
    %79 = arith.negf %78 : vector<2x32xf32>
    %80 = math.exp %79 : vector<2x32xf32>
    %cst_44 = arith.constant 1.000000e+00 : f32
    %81 = vector.broadcast %cst_44 : f32 to vector<2x32xf32>
    %82 = arith.addf %81, %80 : vector<2x32xf32>
    %83 = arith.divf %81, %82 : vector<2x32xf32>
    %84 = vector.extract_strided_slice %17 {offsets = [0, 1, 0], sizes = [2, 1, 32], strides = [1, 1, 1]} : vector<2x8x32xf32> to vector<2x1x32xf32>
    %85 = vector.shape_cast %84 : vector<2x1x32xf32> to vector<2x32xf32>
    %86 = arith.addf %85, %72 : vector<2x32xf32>
    %87 = arith.negf %86 : vector<2x32xf32>
    %88 = math.exp %87 : vector<2x32xf32>
    %cst_45 = arith.constant 1.000000e+00 : f32
    %89 = vector.broadcast %cst_45 : f32 to vector<2x32xf32>
    %90 = arith.addf %89, %88 : vector<2x32xf32>
    %91 = arith.divf %89, %90 : vector<2x32xf32>
    %92 = vector.extract_strided_slice %25 {offsets = [0, 1, 0], sizes = [2, 1, 32], strides = [1, 1, 1]} : vector<2x8x32xf32> to vector<2x1x32xf32>
    %93 = vector.shape_cast %92 : vector<2x1x32xf32> to vector<2x32xf32>
    %94 = arith.mulf %83, %75 : vector<2x32xf32>
    %95 = arith.addf %93, %94 : vector<2x32xf32>
    %96 = math.tanh %95 : vector<2x32xf32>
    %cst_46 = arith.constant 1.000000e+00 : f32
    %97 = vector.broadcast %cst_46 : f32 to vector<2x32xf32>
    %98 = arith.subf %97, %91 : vector<2x32xf32>
    %99 = arith.mulf %98, %96 : vector<2x32xf32>
    %100 = arith.mulf %91, %64 : vector<2x32xf32>
    %101 = arith.addf %99, %100 : vector<2x32xf32>
    %102 = vector.extract_strided_slice %0 {offsets = [0, 1, 0], sizes = [2, 1, 32], strides = [1, 1, 1]} : vector<2x8x32xf32> to vector<2x1x32xf32>
    %103 = vector.shape_cast %102 : vector<2x1x32xf32> to vector<2x32xf32>
    %104 = arith.addf %101, %103 : vector<2x32xf32>
    %c0_47 = arith.constant 0 : index
    %c1_48 = arith.constant 1 : index
    %c0_49 = arith.constant 0 : index
    %105 = vector.load %arg7[%c0_47, %c1_48, %c0_49] : memref<2x8x32xf32, #tpu.memory_space<vmem>>, vector<2x1x32xf32>
    %106 = vector.shape_cast %105 : vector<2x1x32xf32> to vector<2x32xf32>
    %107 = vector.shape_cast %104 : vector<2x32xf32> to vector<2x1x32xf32>
    tpu.vector_store %arg7[%c0_47, %c1_48, %c0_49], %107 {strides = array<i32>} : memref<2x8x32xf32, #tpu.memory_space<vmem>>, vector<2x1x32xf32>,
    %cst_50 = arith.constant dense<0.000000e+00> : vector<2x32xf32>
    %108 = tpu.matmul %101, %27, %cst_50 {dimension_numbers = #tpu.dot_dimension_numbers<[1], [0], [0], [1], [0, 0, 1, 1], [], []>} : vector<2x32xf32>, vector<32x32xf32>, vector<2x32xf32> -> vector<2x32xf32>
    %cst_51 = arith.constant dense<0.000000e+00> : vector<2x32xf32>
    %109 = tpu.matmul %101, %29, %cst_51 {dimension_numbers = #tpu.dot_dimension_numbers<[1], [0], [0], [1], [0, 0, 1, 1], [], []>} : vector<2x32xf32>, vector<32x32xf32>, vector<2x32xf32> -> vector<2x32xf32>
    %cst_52 = arith.constant dense<0.000000e+00> : vector<2x32xf32>
    %110 = tpu.matmul %101, %31, %cst_52 {dimension_numbers = #tpu.dot_dimension_numbers<[1], [0], [0], [1], [0, 0, 1, 1], [], []>} : vector<2x32xf32>, vector<32x32xf32>, vector<2x32xf32> -> vector<2x32xf32>
    %111 = vector.broadcast %32 : vector<1x32xf32> to vector<2x32xf32>
    %112 = arith.addf %110, %111 : vector<2x32xf32>
    %113 = vector.extract_strided_slice %9 {offsets = [0, 2, 0], sizes = [2, 1, 32], strides = [1, 1, 1]} : vector<2x8x32xf32> to vector<2x1x32xf32>
    %114 = vector.shape_cast %113 : vector<2x1x32xf32> to vector<2x32xf32>
    %115 = arith.addf %114, %108 : vector<2x32xf32>
    %116 = arith.negf %115 : vector<2x32xf32>
    %117 = math.exp %116 : vector<2x32xf32>
    %cst_53 = arith.constant 1.000000e+00 : f32
    %118 = vector.broadcast %cst_53 : f32 to vector<2x32xf32>
    %119 = arith.addf %118, %117 : vector<2x32xf32>
    %120 = arith.divf %118, %119 : vector<2x32xf32>
    %121 = vector.extract_strided_slice %17 {offsets = [0, 2, 0], sizes = [2, 1, 32], strides = [1, 1, 1]} : vector<2x8x32xf32> to vector<2x1x32xf32>
    %122 = vector.shape_cast %121 : vector<2x1x32xf32> to vector<2x32xf32>
    %123 = arith.addf %122, %109 : vector<2x32xf32>
    %124 = arith.negf %123 : vector<2x32xf32>
    %125 = math.exp %124 : vector<2x32xf32>
    %cst_54 = arith.constant 1.000000e+00 : f32
    %126 = vector.broadcast %cst_54 : f32 to vector<2x32xf32>
    %127 = arith.addf %126, %125 : vector<2x32xf32>
    %128 = arith.divf %126, %127 : vector<2x32xf32>
    %129 = vector.extract_strided_slice %25 {offsets = [0, 2, 0], sizes = [2, 1, 32], strides = [1, 1, 1]} : vector<2x8x32xf32> to vector<2x1x32xf32>
    %130 = vector.shape_cast %129 : vector<2x1x32xf32> to vector<2x32xf32>
    %131 = arith.mulf %120, %112 : vector<2x32xf32>
    %132 = arith.addf %130, %131 : vector<2x32xf32>
    %133 = math.tanh %132 : vector<2x32xf32>
    %cst_55 = arith.constant 1.000000e+00 : f32
    %134 = vector.broadcast %cst_55 : f32 to vector<2x32xf32>
    %135 = arith.subf %134, %128 : vector<2x32xf32>
    %136 = arith.mulf %135, %133 : vector<2x32xf32>
    %137 = arith.mulf %128, %101 : vector<2x32xf32>
    %138 = arith.addf %136, %137 : vector<2x32xf32>
    %139 = vector.extract_strided_slice %0 {offsets = [0, 2, 0], sizes = [2, 1, 32], strides = [1, 1, 1]} : vector<2x8x32xf32> to vector<2x1x32xf32>
    %140 = vector.shape_cast %139 : vector<2x1x32xf32> to vector<2x32xf32>
    %141 = arith.addf %138, %140 : vector<2x32xf32>
    %c0_56 = arith.constant 0 : index
    %c2_57 = arith.constant 2 : index
    %c0_58 = arith.constant 0 : index
    %142 = vector.load %arg7[%c0_56, %c2_57, %c0_58] : memref<2x8x32xf32, #tpu.memory_space<vmem>>, vector<2x1x32xf32>
    %143 = vector.shape_cast %142 : vector<2x1x32xf32> to vector<2x32xf32>
    %144 = vector.shape_cast %141 : vector<2x32xf32> to vector<2x1x32xf32>
    tpu.vector_store %arg7[%c0_56, %c2_57, %c0_58], %144 {strides = array<i32>} : memref<2x8x32xf32, #tpu.memory_space<vmem>>, vector<2x1x32xf32>,
    %cst_59 = arith.constant dense<0.000000e+00> : vector<2x32xf32>
    %145 = tpu.matmul %138, %27, %cst_59 {dimension_numbers = #tpu.dot_dimension_numbers<[1], [0], [0], [1], [0, 0, 1, 1], [], []>} : vector<2x32xf32>, vector<32x32xf32>, vector<2x32xf32> -> vector<2x32xf32>
    %cst_60 = arith.constant dense<0.000000e+00> : vector<2x32xf32>
    %146 = tpu.matmul %138, %29, %cst_60 {dimension_numbers = #tpu.dot_dimension_numbers<[1], [0], [0], [1], [0, 0, 1, 1], [], []>} : vector<2x32xf32>, vector<32x32xf32>, vector<2x32xf32> -> vector<2x32xf32>
    %cst_61 = arith.constant dense<0.000000e+00> : vector<2x32xf32>
    %147 = tpu.matmul %138, %31, %cst_61 {dimension_numbers = #tpu.dot_dimension_numbers<[1], [0], [0], [1], [0, 0, 1, 1], [], []>} : vector<2x32xf32>, vector<32x32xf32>, vector<2x32xf32> -> vector<2x32xf32>
    %148 = vector.broadcast %32 : vector<1x32xf32> to vector<2x32xf32>
    %149 = arith.addf %147, %148 : vector<2x32xf32>
    %150 = vector.extract_strided_slice %9 {offsets = [0, 3, 0], sizes = [2, 1, 32], strides = [1, 1, 1]} : vector<2x8x32xf32> to vector<2x1x32xf32>
    %151 = vector.shape_cast %150 : vector<2x1x32xf32> to vector<2x32xf32>
    %152 = arith.addf %151, %145 : vector<2x32xf32>
    %153 = arith.negf %152 : vector<2x32xf32>
    %154 = math.exp %153 : vector<2x32xf32>
    %cst_62 = arith.constant 1.000000e+00 : f32
    %155 = vector.broadcast %cst_62 : f32 to vector<2x32xf32>
    %156 = arith.addf %155, %154 : vector<2x32xf32>
    %157 = arith.divf %155, %156 : vector<2x32xf32>
    %158 = vector.extract_strided_slice %17 {offsets = [0, 3, 0], sizes = [2, 1, 32], strides = [1, 1, 1]} : vector<2x8x32xf32> to vector<2x1x32xf32>
    %159 = vector.shape_cast %158 : vector<2x1x32xf32> to vector<2x32xf32>
    %160 = arith.addf %159, %146 : vector<2x32xf32>
    %161 = arith.negf %160 : vector<2x32xf32>
    %162 = math.exp %161 : vector<2x32xf32>
    %cst_63 = arith.constant 1.000000e+00 : f32
    %163 = vector.broadcast %cst_63 : f32 to vector<2x32xf32>
    %164 = arith.addf %163, %162 : vector<2x32xf32>
    %165 = arith.divf %163, %164 : vector<2x32xf32>
    %166 = vector.extract_strided_slice %25 {offsets = [0, 3, 0], sizes = [2, 1, 32], strides = [1, 1, 1]} : vector<2x8x32xf32> to vector<2x1x32xf32>
    %167 = vector.shape_cast %166 : vector<2x1x32xf32> to vector<2x32xf32>
    %168 = arith.mulf %157, %149 : vector<2x32xf32>
    %169 = arith.addf %167, %168 : vector<2x32xf32>
    %170 = math.tanh %169 : vector<2x32xf32>
    %cst_64 = arith.constant 1.000000e+00 : f32
    %171 = vector.broadcast %cst_64 : f32 to vector<2x32xf32>
    %172 = arith.subf %171, %165 : vector<2x32xf32>
    %173 = arith.mulf %172, %170 : vector<2x32xf32>
    %174 = arith.mulf %165, %138 : vector<2x32xf32>
    %175 = arith.addf %173, %174 : vector<2x32xf32>
    %176 = vector.extract_strided_slice %0 {offsets = [0, 3, 0], sizes = [2, 1, 32], strides = [1, 1, 1]} : vector<2x8x32xf32> to vector<2x1x32xf32>
    %177 = vector.shape_cast %176 : vector<2x1x32xf32> to vector<2x32xf32>
    %178 = arith.addf %175, %177 : vector<2x32xf32>
    %c0_65 = arith.constant 0 : index
    %c3 = arith.constant 3 : index
    %c0_66 = arith.constant 0 : index
    %179 = vector.load %arg7[%c0_65, %c3, %c0_66] : memref<2x8x32xf32, #tpu.memory_space<vmem>>, vector<2x1x32xf32>
    %180 = vector.shape_cast %179 : vector<2x1x32xf32> to vector<2x32xf32>
    %181 = vector.shape_cast %178 : vector<2x32xf32> to vector<2x1x32xf32>
    tpu.vector_store %arg7[%c0_65, %c3, %c0_66], %181 {strides = array<i32>} : memref<2x8x32xf32, #tpu.memory_space<vmem>>, vector<2x1x32xf32>,
    %cst_67 = arith.constant dense<0.000000e+00> : vector<2x32xf32>
    %182 = tpu.matmul %175, %27, %cst_67 {dimension_numbers = #tpu.dot_dimension_numbers<[1], [0], [0], [1], [0, 0, 1, 1], [], []>} : vector<2x32xf32>, vector<32x32xf32>, vector<2x32xf32> -> vector<2x32xf32>
    %cst_68 = arith.constant dense<0.000000e+00> : vector<2x32xf32>
    %183 = tpu.matmul %175, %29, %cst_68 {dimension_numbers = #tpu.dot_dimension_numbers<[1], [0], [0], [1], [0, 0, 1, 1], [], []>} : vector<2x32xf32>, vector<32x32xf32>, vector<2x32xf32> -> vector<2x32xf32>
    %cst_69 = arith.constant dense<0.000000e+00> : vector<2x32xf32>
    %184 = tpu.matmul %175, %31, %cst_69 {dimension_numbers = #tpu.dot_dimension_numbers<[1], [0], [0], [1], [0, 0, 1, 1], [], []>} : vector<2x32xf32>, vector<32x32xf32>, vector<2x32xf32> -> vector<2x32xf32>
    %185 = vector.broadcast %32 : vector<1x32xf32> to vector<2x32xf32>
    %186 = arith.addf %184, %185 : vector<2x32xf32>
    %187 = vector.extract_strided_slice %9 {offsets = [0, 4, 0], sizes = [2, 1, 32], strides = [1, 1, 1]} : vector<2x8x32xf32> to vector<2x1x32xf32>
    %188 = vector.shape_cast %187 : vector<2x1x32xf32> to vector<2x32xf32>
    %189 = arith.addf %188, %182 : vector<2x32xf32>
    %190 = arith.negf %189 : vector<2x32xf32>
    %191 = math.exp %190 : vector<2x32xf32>
    %cst_70 = arith.constant 1.000000e+00 : f32
    %192 = vector.broadcast %cst_70 : f32 to vector<2x32xf32>
    %193 = arith.addf %192, %191 : vector<2x32xf32>
    %194 = arith.divf %192, %193 : vector<2x32xf32>
    %195 = vector.extract_strided_slice %17 {offsets = [0, 4, 0], sizes = [2, 1, 32], strides = [1, 1, 1]} : vector<2x8x32xf32> to vector<2x1x32xf32>
    %196 = vector.shape_cast %195 : vector<2x1x32xf32> to vector<2x32xf32>
    %197 = arith.addf %196, %183 : vector<2x32xf32>
    %198 = arith.negf %197 : vector<2x32xf32>
    %199 = math.exp %198 : vector<2x32xf32>
    %cst_71 = arith.constant 1.000000e+00 : f32
    %200 = vector.broadcast %cst_71 : f32 to vector<2x32xf32>
    %201 = arith.addf %200, %199 : vector<2x32xf32>
    %202 = arith.divf %200, %201 : vector<2x32xf32>
    %203 = vector.extract_strided_slice %25 {offsets = [0, 4, 0], sizes = [2, 1, 32], strides = [1, 1, 1]} : vector<2x8x32xf32> to vector<2x1x32xf32>
    %204 = vector.shape_cast %203 : vector<2x1x32xf32> to vector<2x32xf32>
    %205 = arith.mulf %194, %186 : vector<2x32xf32>
    %206 = arith.addf %204, %205 : vector<2x32xf32>
    %207 = math.tanh %206 : vector<2x32xf32>
    %cst_72 = arith.constant 1.000000e+00 : f32
    %208 = vector.broadcast %cst_72 : f32 to vector<2x32xf32>
    %209 = arith.subf %208, %202 : vector<2x32xf32>
    %210 = arith.mulf %209, %207 : vector<2x32xf32>
    %211 = arith.mulf %202, %175 : vector<2x32xf32>
    %212 = arith.addf %210, %211 : vector<2x32xf32>
    %213 = vector.extract_strided_slice %0 {offsets = [0, 4, 0], sizes = [2, 1, 32], strides = [1, 1, 1]} : vector<2x8x32xf32> to vector<2x1x32xf32>
    %214 = vector.shape_cast %213 : vector<2x1x32xf32> to vector<2x32xf32>
    %215 = arith.addf %212, %214 : vector<2x32xf32>
    %c0_73 = arith.constant 0 : index
    %c4 = arith.constant 4 : index
    %c0_74 = arith.constant 0 : index
    %216 = vector.load %arg7[%c0_73, %c4, %c0_74] : memref<2x8x32xf32, #tpu.memory_space<vmem>>, vector<2x1x32xf32>
    %217 = vector.shape_cast %216 : vector<2x1x32xf32> to vector<2x32xf32>
    %218 = vector.shape_cast %215 : vector<2x32xf32> to vector<2x1x32xf32>
    tpu.vector_store %arg7[%c0_73, %c4, %c0_74], %218 {strides = array<i32>} : memref<2x8x32xf32, #tpu.memory_space<vmem>>, vector<2x1x32xf32>,
    %cst_75 = arith.constant dense<0.000000e+00> : vector<2x32xf32>
    %219 = tpu.matmul %212, %27, %cst_75 {dimension_numbers = #tpu.dot_dimension_numbers<[1], [0], [0], [1], [0, 0, 1, 1], [], []>} : vector<2x32xf32>, vector<32x32xf32>, vector<2x32xf32> -> vector<2x32xf32>
    %cst_76 = arith.constant dense<0.000000e+00> : vector<2x32xf32>
    %220 = tpu.matmul %212, %29, %cst_76 {dimension_numbers = #tpu.dot_dimension_numbers<[1], [0], [0], [1], [0, 0, 1, 1], [], []>} : vector<2x32xf32>, vector<32x32xf32>, vector<2x32xf32> -> vector<2x32xf32>
    %cst_77 = arith.constant dense<0.000000e+00> : vector<2x32xf32>
    %221 = tpu.matmul %212, %31, %cst_77 {dimension_numbers = #tpu.dot_dimension_numbers<[1], [0], [0], [1], [0, 0, 1, 1], [], []>} : vector<2x32xf32>, vector<32x32xf32>, vector<2x32xf32> -> vector<2x32xf32>
    %222 = vector.broadcast %32 : vector<1x32xf32> to vector<2x32xf32>
    %223 = arith.addf %221, %222 : vector<2x32xf32>
    %224 = vector.extract_strided_slice %9 {offsets = [0, 5, 0], sizes = [2, 1, 32], strides = [1, 1, 1]} : vector<2x8x32xf32> to vector<2x1x32xf32>
    %225 = vector.shape_cast %224 : vector<2x1x32xf32> to vector<2x32xf32>
    %226 = arith.addf %225, %219 : vector<2x32xf32>
    %227 = arith.negf %226 : vector<2x32xf32>
    %228 = math.exp %227 : vector<2x32xf32>
    %cst_78 = arith.constant 1.000000e+00 : f32
    %229 = vector.broadcast %cst_78 : f32 to vector<2x32xf32>
    %230 = arith.addf %229, %228 : vector<2x32xf32>
    %231 = arith.divf %229, %230 : vector<2x32xf32>
    %232 = vector.extract_strided_slice %17 {offsets = [0, 5, 0], sizes = [2, 1, 32], strides = [1, 1, 1]} : vector<2x8x32xf32> to vector<2x1x32xf32>
    %233 = vector.shape_cast %232 : vector<2x1x32xf32> to vector<2x32xf32>
    %234 = arith.addf %233, %220 : vector<2x32xf32>
    %235 = arith.negf %234 : vector<2x32xf32>
    %236 = math.exp %235 : vector<2x32xf32>
    %cst_79 = arith.constant 1.000000e+00 : f32
    %237 = vector.broadcast %cst_79 : f32 to vector<2x32xf32>
    %238 = arith.addf %237, %236 : vector<2x32xf32>
    %239 = arith.divf %237, %238 : vector<2x32xf32>
    %240 = vector.extract_strided_slice %25 {offsets = [0, 5, 0], sizes = [2, 1, 32], strides = [1, 1, 1]} : vector<2x8x32xf32> to vector<2x1x32xf32>
    %241 = vector.shape_cast %240 : vector<2x1x32xf32> to vector<2x32xf32>
    %242 = arith.mulf %231, %223 : vector<2x32xf32>
    %243 = arith.addf %241, %242 : vector<2x32xf32>
    %244 = math.tanh %243 : vector<2x32xf32>
    %cst_80 = arith.constant 1.000000e+00 : f32
    %245 = vector.broadcast %cst_80 : f32 to vector<2x32xf32>
    %246 = arith.subf %245, %239 : vector<2x32xf32>
    %247 = arith.mulf %246, %244 : vector<2x32xf32>
    %248 = arith.mulf %239, %212 : vector<2x32xf32>
    %249 = arith.addf %247, %248 : vector<2x32xf32>
    %250 = vector.extract_strided_slice %0 {offsets = [0, 5, 0], sizes = [2, 1, 32], strides = [1, 1, 1]} : vector<2x8x32xf32> to vector<2x1x32xf32>
    %251 = vector.shape_cast %250 : vector<2x1x32xf32> to vector<2x32xf32>
    %252 = arith.addf %249, %251 : vector<2x32xf32>
    %c0_81 = arith.constant 0 : index
    %c5 = arith.constant 5 : index
    %c0_82 = arith.constant 0 : index
    %253 = vector.load %arg7[%c0_81, %c5, %c0_82] : memref<2x8x32xf32, #tpu.memory_space<vmem>>, vector<2x1x32xf32>
    %254 = vector.shape_cast %253 : vector<2x1x32xf32> to vector<2x32xf32>
    %255 = vector.shape_cast %252 : vector<2x32xf32> to vector<2x1x32xf32>
    tpu.vector_store %arg7[%c0_81, %c5, %c0_82], %255 {strides = array<i32>} : memref<2x8x32xf32, #tpu.memory_space<vmem>>, vector<2x1x32xf32>,
    %cst_83 = arith.constant dense<0.000000e+00> : vector<2x32xf32>
    %256 = tpu.matmul %249, %27, %cst_83 {dimension_numbers = #tpu.dot_dimension_numbers<[1], [0], [0], [1], [0, 0, 1, 1], [], []>} : vector<2x32xf32>, vector<32x32xf32>, vector<2x32xf32> -> vector<2x32xf32>
    %cst_84 = arith.constant dense<0.000000e+00> : vector<2x32xf32>
    %257 = tpu.matmul %249, %29, %cst_84 {dimension_numbers = #tpu.dot_dimension_numbers<[1], [0], [0], [1], [0, 0, 1, 1], [], []>} : vector<2x32xf32>, vector<32x32xf32>, vector<2x32xf32> -> vector<2x32xf32>
    %cst_85 = arith.constant dense<0.000000e+00> : vector<2x32xf32>
    %258 = tpu.matmul %249, %31, %cst_85 {dimension_numbers = #tpu.dot_dimension_numbers<[1], [0], [0], [1], [0, 0, 1, 1], [], []>} : vector<2x32xf32>, vector<32x32xf32>, vector<2x32xf32> -> vector<2x32xf32>
    %259 = vector.broadcast %32 : vector<1x32xf32> to vector<2x32xf32>
    %260 = arith.addf %258, %259 : vector<2x32xf32>
    %261 = vector.extract_strided_slice %9 {offsets = [0, 6, 0], sizes = [2, 1, 32], strides = [1, 1, 1]} : vector<2x8x32xf32> to vector<2x1x32xf32>
    %262 = vector.shape_cast %261 : vector<2x1x32xf32> to vector<2x32xf32>
    %263 = arith.addf %262, %256 : vector<2x32xf32>
    %264 = arith.negf %263 : vector<2x32xf32>
    %265 = math.exp %264 : vector<2x32xf32>
    %cst_86 = arith.constant 1.000000e+00 : f32
    %266 = vector.broadcast %cst_86 : f32 to vector<2x32xf32>
    %267 = arith.addf %266, %265 : vector<2x32xf32>
    %268 = arith.divf %266, %267 : vector<2x32xf32>
    %269 = vector.extract_strided_slice %17 {offsets = [0, 6, 0], sizes = [2, 1, 32], strides = [1, 1, 1]} : vector<2x8x32xf32> to vector<2x1x32xf32>
    %270 = vector.shape_cast %269 : vector<2x1x32xf32> to vector<2x32xf32>
    %271 = arith.addf %270, %257 : vector<2x32xf32>
    %272 = arith.negf %271 : vector<2x32xf32>
    %273 = math.exp %272 : vector<2x32xf32>
    %cst_87 = arith.constant 1.000000e+00 : f32
    %274 = vector.broadcast %cst_87 : f32 to vector<2x32xf32>
    %275 = arith.addf %274, %273 : vector<2x32xf32>
    %276 = arith.divf %274, %275 : vector<2x32xf32>
    %277 = vector.extract_strided_slice %25 {offsets = [0, 6, 0], sizes = [2, 1, 32], strides = [1, 1, 1]} : vector<2x8x32xf32> to vector<2x1x32xf32>
    %278 = vector.shape_cast %277 : vector<2x1x32xf32> to vector<2x32xf32>
    %279 = arith.mulf %268, %260 : vector<2x32xf32>
    %280 = arith.addf %278, %279 : vector<2x32xf32>
    %281 = math.tanh %280 : vector<2x32xf32>
    %cst_88 = arith.constant 1.000000e+00 : f32
    %282 = vector.broadcast %cst_88 : f32 to vector<2x32xf32>
    %283 = arith.subf %282, %276 : vector<2x32xf32>
    %284 = arith.mulf %283, %281 : vector<2x32xf32>
    %285 = arith.mulf %276, %249 : vector<2x32xf32>
    %286 = arith.addf %284, %285 : vector<2x32xf32>
    %287 = vector.extract_strided_slice %0 {offsets = [0, 6, 0], sizes = [2, 1, 32], strides = [1, 1, 1]} : vector<2x8x32xf32> to vector<2x1x32xf32>
    %288 = vector.shape_cast %287 : vector<2x1x32xf32> to vector<2x32xf32>
    %289 = arith.addf %286, %288 : vector<2x32xf32>
    %c0_89 = arith.constant 0 : index
    %c6 = arith.constant 6 : index
    %c0_90 = arith.constant 0 : index
    %290 = vector.load %arg7[%c0_89, %c6, %c0_90] : memref<2x8x32xf32, #tpu.memory_space<vmem>>, vector<2x1x32xf32>
    %291 = vector.shape_cast %290 : vector<2x1x32xf32> to vector<2x32xf32>
    %292 = vector.shape_cast %289 : vector<2x32xf32> to vector<2x1x32xf32>
    tpu.vector_store %arg7[%c0_89, %c6, %c0_90], %292 {strides = array<i32>} : memref<2x8x32xf32, #tpu.memory_space<vmem>>, vector<2x1x32xf32>,
    %cst_91 = arith.constant dense<0.000000e+00> : vector<2x32xf32>
    %293 = tpu.matmul %286, %27, %cst_91 {dimension_numbers = #tpu.dot_dimension_numbers<[1], [0], [0], [1], [0, 0, 1, 1], [], []>} : vector<2x32xf32>, vector<32x32xf32>, vector<2x32xf32> -> vector<2x32xf32>
    %cst_92 = arith.constant dense<0.000000e+00> : vector<2x32xf32>
    %294 = tpu.matmul %286, %29, %cst_92 {dimension_numbers = #tpu.dot_dimension_numbers<[1], [0], [0], [1], [0, 0, 1, 1], [], []>} : vector<2x32xf32>, vector<32x32xf32>, vector<2x32xf32> -> vector<2x32xf32>
    %cst_93 = arith.constant dense<0.000000e+00> : vector<2x32xf32>
    %295 = tpu.matmul %286, %31, %cst_93 {dimension_numbers = #tpu.dot_dimension_numbers<[1], [0], [0], [1], [0, 0, 1, 1], [], []>} : vector<2x32xf32>, vector<32x32xf32>, vector<2x32xf32> -> vector<2x32xf32>
    %296 = vector.broadcast %32 : vector<1x32xf32> to vector<2x32xf32>
    %297 = arith.addf %295, %296 : vector<2x32xf32>
    %298 = vector.extract_strided_slice %9 {offsets = [0, 7, 0], sizes = [2, 1, 32], strides = [1, 1, 1]} : vector<2x8x32xf32> to vector<2x1x32xf32>
    %299 = vector.shape_cast %298 : vector<2x1x32xf32> to vector<2x32xf32>
    %300 = arith.addf %299, %293 : vector<2x32xf32>
    %301 = arith.negf %300 : vector<2x32xf32>
    %302 = math.exp %301 : vector<2x32xf32>
    %cst_94 = arith.constant 1.000000e+00 : f32
    %303 = vector.broadcast %cst_94 : f32 to vector<2x32xf32>
    %304 = arith.addf %303, %302 : vector<2x32xf32>
    %305 = arith.divf %303, %304 : vector<2x32xf32>
    %306 = vector.extract_strided_slice %17 {offsets = [0, 7, 0], sizes = [2, 1, 32], strides = [1, 1, 1]} : vector<2x8x32xf32> to vector<2x1x32xf32>
    %307 = vector.shape_cast %306 : vector<2x1x32xf32> to vector<2x32xf32>
    %308 = arith.addf %307, %294 : vector<2x32xf32>
    %309 = arith.negf %308 : vector<2x32xf32>
    %310 = math.exp %309 : vector<2x32xf32>
    %cst_95 = arith.constant 1.000000e+00 : f32
    %311 = vector.broadcast %cst_95 : f32 to vector<2x32xf32>
    %312 = arith.addf %311, %310 : vector<2x32xf32>
    %313 = arith.divf %311, %312 : vector<2x32xf32>
    %314 = vector.extract_strided_slice %25 {offsets = [0, 7, 0], sizes = [2, 1, 32], strides = [1, 1, 1]} : vector<2x8x32xf32> to vector<2x1x32xf32>
    %315 = vector.shape_cast %314 : vector<2x1x32xf32> to vector<2x32xf32>
    %316 = arith.mulf %305, %297 : vector<2x32xf32>
    %317 = arith.addf %315, %316 : vector<2x32xf32>
    %318 = math.tanh %317 : vector<2x32xf32>
    %cst_96 = arith.constant 1.000000e+00 : f32
    %319 = vector.broadcast %cst_96 : f32 to vector<2x32xf32>
    %320 = arith.subf %319, %313 : vector<2x32xf32>
    %321 = arith.mulf %320, %318 : vector<2x32xf32>
    %322 = arith.mulf %313, %286 : vector<2x32xf32>
    %323 = arith.addf %321, %322 : vector<2x32xf32>
    %324 = vector.extract_strided_slice %0 {offsets = [0, 7, 0], sizes = [2, 1, 32], strides = [1, 1, 1]} : vector<2x8x32xf32> to vector<2x1x32xf32>
    %325 = vector.shape_cast %324 : vector<2x1x32xf32> to vector<2x32xf32>
    %326 = arith.addf %323, %325 : vector<2x32xf32>
    %c0_97 = arith.constant 0 : index
    %c7 = arith.constant 7 : index
    %c0_98 = arith.constant 0 : index
    %327 = vector.load %arg7[%c0_97, %c7, %c0_98] : memref<2x8x32xf32, #tpu.memory_space<vmem>>, vector<2x1x32xf32>
    %328 = vector.shape_cast %327 : vector<2x1x32xf32> to vector<2x32xf32>
    %329 = vector.shape_cast %326 : vector<2x32xf32> to vector<2x1x32xf32>
    tpu.vector_store %arg7[%c0_97, %c7, %c0_98], %329 {strides = array<i32>} : memref<2x8x32xf32, #tpu.memory_space<vmem>>, vector<2x1x32xf32>,
    %c0_99 = arith.constant 0 : index
    %c0_100 = arith.constant 0 : index
    %c0_101 = arith.constant 0 : index
    %330 = vector.load %arg7[%c0_99, %c0_100, %c0_101] : memref<2x8x32xf32, #tpu.memory_space<vmem>>, vector<2x8x32xf32>
    %cst_102 = arith.constant dense<0.000000e+00> : vector<2x8xf32>
    %331 = vector.multi_reduction <add>, %330, %cst_102 [2] : vector<2x8x32xf32> to vector<2x8xf32>
    %332 = vector.shape_cast %331 : vector<2x8xf32> to vector<2x8x1xf32>
    %cst_103 = arith.constant 3.200000e+01 : f32
    %333 = vector.broadcast %cst_103 : f32 to vector<2x8x1xf32>
    %334 = arith.divf %332, %333 : vector<2x8x1xf32>
    %335 = vector.broadcast %334 : vector<2x8x1xf32> to vector<2x8x32xf32>
    %336 = arith.subf %330, %335 : vector<2x8x32xf32>
    %337 = arith.mulf %336, %336 : vector<2x8x32xf32>
    %cst_104 = arith.constant dense<0.000000e+00> : vector<2x8xf32>
    %338 = vector.multi_reduction <add>, %337, %cst_104 [2] : vector<2x8x32xf32> to vector<2x8xf32>
    %339 = vector.shape_cast %338 : vector<2x8xf32> to vector<2x8x1xf32>
    %cst_105 = arith.constant 3.200000e+01 : f32
    %340 = vector.broadcast %cst_105 : f32 to vector<2x8x1xf32>
    %341 = arith.divf %339, %340 : vector<2x8x1xf32>
    %342 = vector.broadcast %334 : vector<2x8x1xf32> to vector<2x8x32xf32>
    %343 = arith.subf %330, %342 : vector<2x8x32xf32>
    %cst_106 = arith.constant 9.99999996E-13 : f32
    %344 = vector.broadcast %cst_106 : f32 to vector<2x8x1xf32>
    %345 = arith.addf %341, %344 : vector<2x8x1xf32>
    %346 = math.rsqrt %345 : vector<2x8x1xf32>
    %347 = vector.broadcast %346 : vector<2x8x1xf32> to vector<2x8x32xf32>
    %348 = arith.mulf %343, %347 : vector<2x8x32xf32>
    %c0_107 = arith.constant 0 : index
    %c0_108 = arith.constant 0 : index
    %349 = vector.load %arg5[%c0_107, %c0_108] : memref<1x32xf32, #tpu.memory_space<vmem>>, vector<1x32xf32>
    %350 = vector.shape_cast %349 : vector<1x32xf32> to vector<1x1x32xf32>
    %351 = vector.broadcast %350 : vector<1x1x32xf32> to vector<2x8x32xf32>
    %352 = arith.mulf %348, %351 : vector<2x8x32xf32>
    %c0_109 = arith.constant 0 : index
    %c0_110 = arith.constant 0 : index
    %353 = vector.load %arg6[%c0_109, %c0_110] : memref<1x32xf32, #tpu.memory_space<vmem>>, vector<1x32xf32>
    %354 = vector.shape_cast %353 : vector<1x32xf32> to vector<1x1x32xf32>
    %355 = vector.broadcast %354 : vector<1x1x32xf32> to vector<2x8x32xf32>
    %356 = arith.addf %352, %355 : vector<2x8x32xf32>
    %c0_111 = arith.constant 0 : index
    %c0_112 = arith.constant 0 : index
    %c0_113 = arith.constant 0 : index
    %357 = vector.load %arg7[%c0_111, %c0_112, %c0_113] : memref<2x8x32xf32, #tpu.memory_space<vmem>>, vector<2x8x32xf32>
    tpu.vector_store %arg7[%c0_111, %c0_112, %c0_113], %356 {strides = array<i32>} : memref<2x8x32xf32, #tpu.memory_space<vmem>>, vector<2x8x32xf32>,
    return
  }
}

</mosaic_0001>

<llo_original>
// kernel: tpu_custom_call.1
$region0: #{tpu_custom_call.1}
  #allocation0 [shape = 'u32[]', space=smem, size = 0x4, offset = 0x4, fixed_abs, tag = 'smem constant byte address 0x4 - core index']
  #allocation1 [shape = 'u32[72,128]{1,0:T(1,128)}', space=vmem, size = 0x9000, scoped, tag = 'internal scratch']
  %s0 = inlined_call_operand.hbm [shape: f32[2,8,32], index: 0, kind: input, shape index: {}]
  %s1 = inlined_call_operand.hbm [shape: f32[3,32,32], index: 1, kind: input, shape index: {}]
  %s2 = inlined_call_operand.hbm [shape: f32[3,32,32], index: 2, kind: input, shape index: {}]
  %s3 = inlined_call_operand.hbm [shape: f32[3,1,32], index: 3, kind: input, shape index: {}]
  %s4 = inlined_call_operand.vmem [shape: f32[1,32], index: 4, kind: input, shape index: {}]
  %s5 = inlined_call_operand.vmem [shape: f32[1,32], index: 5, kind: input, shape index: {}]
  %s6 = inlined_call_operand.vmem [shape: f32[1,32], index: 6, kind: input, shape index: {}]
  %s7 = inlined_call_operand.hbm [shape: f32[2,8,32], index: 7, kind: output, shape index: {}]
  %s8 = sld [smem:[#allocation0]]
  $region54: #{tpu_custom_call.1} parent=0
    _
  %s10 = ssub.s32 1, %s8
  %s11 = scalar_select 0, %s10, %s8
  $region1: #{tpu_custom_call.1} parent=0
    #allocation2 [shape = 'u8[8192]{0}', space=vmem, size = 0x2000, scoped, tag = 'input window, operand 0, single buffered']
    #allocation3 [shape = 's32[1]{0}', space=sflag, size = 0x4, scoped, tag = 'scoped memory for tpu_custom_call.1']
    #allocation4 [shape = 's32[1]{0}', space=sflag, size = 0x4, scoped, tag = 'scoped memory for tpu_custom_call.1']
    #allocation5 [shape = 'u8[49152]{0}', space=vmem, size = 0xc000, scoped, tag = 'input window, operand 1, single buffered']
    #allocation6 [shape = 's32[1]{0}', space=sflag, size = 0x4, scoped, tag = 'scoped memory for tpu_custom_call.1']
    #allocation7 [shape = 'u8[49152]{0}', space=vmem, size = 0xc000, scoped, tag = 'input window, operand 2, single buffered']
    #allocation8 [shape = 'u8[1536]{0}', space=vmem, size = 0x800, scoped, tag = 'input window, operand 3, single buffered']
    #allocation9 [shape = 's32[1]{0}', space=sflag, size = 0x4, scoped, tag = 'scoped memory for tpu_custom_call.1']
    #allocation10 [shape = 'u8[8192]{0}', space=vmem, size = 0x2000, scoped, tag = 'output window, operand 0, single buffered']
    %12 = vsyncpa [#allocation3], 0
    %13 = vsyncpa [#allocation6], 0
    %14 = vsyncpa [#allocation9], 0
    %15 = vsyncpa [#allocation4], 0
    // Predicated region
    $region2: #{tpu_custom_call.1} parent=1 // pred_check
      _
    $region3: #{tpu_custom_call.1} parent=1 // pred_check_branch
      %17 = sbr.rel (0) target = $region5
    $region4: #{tpu_custom_call.1} parent=1 // pred_region
      %19 = vsyncadd [#allocation3], 0
      %s20 = sshll.u32 %s0, 4
      %s21 = int_to_ptr.hbm [resolvable:$true] %s20
      %s22 = sshll.u32 [#allocation2], 4
      %s23 = int_to_ptr.vmem [resolvable:$true] %s22
      %28 = dma.hbm_to_vmem [thread:$0]  %s21, 256, %s23, [#allocation3], 128, 128, 8
    $region5: #{tpu_custom_call.1} parent=1 // pred_fallthru
      _
    // Predicated region
    $region6: #{tpu_custom_call.1} parent=1 // pred_check
      _
    $region7: #{tpu_custom_call.1} parent=1 // pred_check_branch
      %30 = sbr.rel (0) target = $region9
    $region8: #{tpu_custom_call.1} parent=1 // pred_region
      %32 = vsyncadd [#allocation6], 0
      %s33 = sshll.u32 %s1, 4
      %s34 = int_to_ptr.hbm [resolvable:$true] %s33
      %s35 = sshll.u32 [#allocation5], 4
      %s36 = int_to_ptr.vmem [resolvable:$true] %s35
      %41 = dma.hbm_to_vmem [thread:$0]  %s34, 1536, %s36, [#allocation6], 128, 128, 8
    $region9: #{tpu_custom_call.1} parent=1 // pred_fallthru
      _
    // Predicated region
    $region10: #{tpu_custom_call.1} parent=1 // pred_check
      _
    $region11: #{tpu_custom_call.1} parent=1 // pred_check_branch
      %43 = sbr.rel (0) target = $region13
    $region12: #{tpu_custom_call.1} parent=1 // pred_region
      %45 = vsyncadd [#allocation6], 0
      %s46 = sshll.u32 %s2, 4
      %s47 = int_to_ptr.hbm [resolvable:$true] %s46
      %s48 = sshll.u32 [#allocation7], 4
      %s49 = int_to_ptr.vmem [resolvable:$true] %s48
      %54 = dma.hbm_to_vmem [thread:$0]  %s47, 1536, %s49, [#allocation6], 128, 128, 8
    $region13: #{tpu_custom_call.1} parent=1 // pred_fallthru
      _
    // Predicated region
    $region14: #{tpu_custom_call.1} parent=1 // pred_check
      _
    $region15: #{tpu_custom_call.1} parent=1 // pred_check_branch
      %56 = sbr.rel (0) target = $region17
    $region16: #{tpu_custom_call.1} parent=1 // pred_region
      %58 = vsyncadd [#allocation9], 0
      %s59 = sshll.u32 %s3, 4
      %s60 = int_to_ptr.hbm [resolvable:$true] %s59
      %s61 = sshll.u32 [#allocation8], 4
      %s62 = int_to_ptr.vmem [resolvable:$true] %s61
      %67 = dma.hbm_to_vmem [thread:$0]  %s60, 48, %s62, [#allocation9], 16, 16, 1
    $region17: #{tpu_custom_call.1} parent=1 // pred_fallthru
      _
    // Predicated region
    $region18: #{tpu_custom_call.1} parent=1 // pred_check
      _
    $region19: #{tpu_custom_call.1} parent=1 // pred_check_branch
      %69 = sbr.rel (0) target = $region21
    $region20: #{tpu_custom_call.1} parent=1 // pred_region
      _
    $region21: #{tpu_custom_call.1} parent=1 // pred_fallthru
      _
    // Predicated region
    $region22: #{tpu_custom_call.1} parent=1 // pred_check
      _
    $region23: #{tpu_custom_call.1} parent=1 // pred_check_branch
      %71 = sbr.rel (0) target = $region25
    $region24: #{tpu_custom_call.1} parent=1 // pred_region
      _
    $region25: #{tpu_custom_call.1} parent=1 // pred_fallthru
      _
    // Predicated region
    $region26: #{tpu_custom_call.1} parent=1 // pred_check
      _
    $region27: #{tpu_custom_call.1} parent=1 // pred_check_branch
      %73 = sbr.rel (0) target = $region29
    $region28: #{tpu_custom_call.1} parent=1 // pred_region
      _
    $region29: #{tpu_custom_call.1} parent=1 // pred_fallthru
      _
    // Predicated region
    $region30: #{tpu_custom_call.1} parent=1 // pred_check
      _
    $region31: #{tpu_custom_call.1} parent=1 // pred_check_branch
      %75 = sbr.rel (0) target = $region33
    $region32: #{tpu_custom_call.1} parent=1 // pred_region
      %77 = dma.done [#allocation3], 256
    $region33: #{tpu_custom_call.1} parent=1 // pred_fallthru
      _
    // Predicated region
    $region34: #{tpu_custom_call.1} parent=1 // pred_check
      _
    $region35: #{tpu_custom_call.1} parent=1 // pred_check_branch
      %79 = sbr.rel (0) target = $region37
    $region36: #{tpu_custom_call.1} parent=1 // pred_region
      %81 = dma.done [#allocation6], 1536
    $region37: #{tpu_custom_call.1} parent=1 // pred_fallthru
      _
    // Predicated region
    $region38: #{tpu_custom_call.1} parent=1 // pred_check
      _
    $region39: #{tpu_custom_call.1} parent=1 // pred_check_branch
      %83 = sbr.rel (0) target = $region41
    $region40: #{tpu_custom_call.1} parent=1 // pred_region
      %85 = dma.done [#allocation6], 1536
    $region41: #{tpu_custom_call.1} parent=1 // pred_fallthru
      _
    // Predicated region
    $region42: #{tpu_custom_call.1} parent=1 // pred_check
      _
    $region43: #{tpu_custom_call.1} parent=1 // pred_check_branch
      %87 = sbr.rel (0) target = $region45
    $region44: #{tpu_custom_call.1} parent=1 // pred_region
      %89 = dma.done [#allocation9], 48
    $region45: #{tpu_custom_call.1} parent=1 // pred_fallthru
      _
    %v90 = vld [vmem:[#allocation2] sm:$0xff]
    %v91 = vld [vmem:[#allocation2 + $0x8] sm:$0xff]
    %v92 = vld [vmem:[#allocation5] sm:$0xff]
    %v93 = vld [vmem:[#allocation5 + $0x8] sm:$0xff]
    %v94 = vld [vmem:[#allocation5 + $0x10] sm:$0xff]
    %v95 = vld [vmem:[#allocation5 + $0x18] sm:$0xff]
    %v96 = vld [vmem:[#allocation8] sm:$0x1]
    %v98 = vperm.slane %v96, 0
    %vm100 = vcmask 261120
    %v102 = vsel %vm100, %v90, 0
    %v105 = vsel %vm100, %v91, 0
    %107 = vmatpush.msra.mxu0 0.0
    %108 = vmatpush.msra.mxu0 0.0
    %109 = vmatpush.msra.mxu0 0.0
    %110 = vmatpush.msra.mxu0 0.0
    %111 = vmatpush.msra.mxu0 0.0
    %112 = vmatpush.msra.mxu0 0.0
    %113 = vmatpush.msra.mxu0 0.0
    %114 = vmatpush.msra.mxu0 0.0
    %115 = vmatpush.msra.mxu0 0.0
    %116 = vmatpush.msra.mxu0 0.0
    %117 = vmatpush.msra.mxu0 0.0
    %118 = vmatpush.msra.mxu0 0.0
    %119 = vmatpush.msra.mxu0 %v95
    %120 = vmatpush.msra.mxu0 %v94
    %121 = vmatpush.msra.mxu0 %v93
    %122 = vmatpush.msra.mxu0 %v92
    %123 = vmatmul.f32.gmra.mxu0 %v102
    %v124 = vpop.f32.mrf.mxu0
    %v125 = vadd.f32 %v98, %v124
    %126 = vmatmul.f32.gmra.mxu0 %v105
    %v127 = vpop.f32.mrf.mxu0
    %v128 = vadd.f32 %v98, %v127
    %129 = vdwg.mxu0
    %s130 = scalar_lea.vmem [#allocation5], 32
    %v131 = vld [vmem:[%s130] sm:$0xff]
    %v132 = vld [vmem:[%s130 + $0x8] sm:$0xff]
    %v133 = vld [vmem:[%s130 + $0x10] sm:$0xff]
    %v134 = vld [vmem:[%s130 + $0x18] sm:$0xff]
    %s135 = scalar_lea.vmem [#allocation8], 1
    %v136 = vld [vmem:[%s135] sm:$0x1]
    %v138 = vperm.slane %v136, 0
    %140 = vmatpush.msra.mxu0 0.0
    %141 = vmatpush.msra.mxu0 0.0
    %142 = vmatpush.msra.mxu0 0.0
    %143 = vmatpush.msra.mxu0 0.0
    %144 = vmatpush.msra.mxu0 0.0
    %145 = vmatpush.msra.mxu0 0.0
    %146 = vmatpush.msra.mxu0 0.0
    %147 = vmatpush.msra.mxu0 0.0
    %148 = vmatpush.msra.mxu0 0.0
    %149 = vmatpush.msra.mxu0 0.0
    %150 = vmatpush.msra.mxu0 0.0
    %151 = vmatpush.msra.mxu0 0.0
    %152 = vmatpush.msra.mxu0 %v134
    %153 = vmatpush.msra.mxu0 %v133
    %154 = vmatpush.msra.mxu0 %v132
    %155 = vmatpush.msra.mxu0 %v131
    %156 = vmatmul.f32.gmra.mxu0 %v102
    %v157 = vpop.f32.mrf.mxu0
    %v158 = vadd.f32 %v138, %v157
    %159 = vmatmul.f32.gmra.mxu0 %v105
    %v160 = vpop.f32.mrf.mxu0
    %v161 = vadd.f32 %v138, %v160
    %162 = vdwg.mxu0
    %s163 = scalar_lea.vmem [#allocation5], 64
    %v164 = vld [vmem:[%s163] sm:$0xff]
    %v165 = vld [vmem:[%s163 + $0x8] sm:$0xff]
    %v166 = vld [vmem:[%s163 + $0x10] sm:$0xff]
    %v167 = vld [vmem:[%s163 + $0x18] sm:$0xff]
    %s168 = scalar_lea.vmem [#allocation8], 2
    %v169 = vld [vmem:[%s168] sm:$0x1]
    %v171 = vperm.slane %v169, 0
    %173 = vmatpush.msra.mxu0 0.0
    %174 = vmatpush.msra.mxu0 0.0
    %175 = vmatpush.msra.mxu0 0.0
    %176 = vmatpush.msra.mxu0 0.0
    %177 = vmatpush.msra.mxu0 0.0
    %178 = vmatpush.msra.mxu0 0.0
    %179 = vmatpush.msra.mxu0 0.0
    %180 = vmatpush.msra.mxu0 0.0
    %181 = vmatpush.msra.mxu0 0.0
    %182 = vmatpush.msra.mxu0 0.0
    %183 = vmatpush.msra.mxu0 0.0
    %184 = vmatpush.msra.mxu0 0.0
    %185 = vmatpush.msra.mxu0 %v167
    %186 = vmatpush.msra.mxu0 %v166
    %187 = vmatpush.msra.mxu0 %v165
    %188 = vmatpush.msra.mxu0 %v164
    %189 = vmatmul.f32.gmra.mxu0 %v102
    %v190 = vpop.f32.mrf.mxu0
    %v191 = vadd.f32 %v171, %v190
    %192 = vmatmul.f32.gmra.mxu0 %v105
    %v193 = vpop.f32.mrf.mxu0
    %v194 = vadd.f32 %v171, %v193
    %195 = vdwg.mxu0
    %v196 = vld [vmem:[#allocation7] sm:$0xff]
    %v197 = vld [vmem:[#allocation7 + $0x8] sm:$0xff]
    %v198 = vld [vmem:[#allocation7 + $0x10] sm:$0xff]
    %v199 = vld [vmem:[#allocation7 + $0x18] sm:$0xff]
    %s200 = scalar_lea.vmem [#allocation7], 32
    %v201 = vld [vmem:[%s200] sm:$0xff]
    %v202 = vld [vmem:[%s200 + $0x8] sm:$0xff]
    %v203 = vld [vmem:[%s200 + $0x10] sm:$0xff]
    %v204 = vld [vmem:[%s200 + $0x18] sm:$0xff]
    %s205 = scalar_lea.vmem [#allocation7], 64
    %v206 = vld [vmem:[%s205] sm:$0xff]
    %v207 = vld [vmem:[%s205 + $0x8] sm:$0xff]
    %v208 = vld [vmem:[%s205 + $0x10] sm:$0xff]
    %v209 = vld [vmem:[%s205 + $0x18] sm:$0xff]
    %v210 = vld [vmem:[%s4] sm:$0x1]
    %v212 = vsel %vm100, 0.0, 0
    %214 = vmatpush.msra.mxu0 0.0
    %215 = vmatpush.msra.mxu0 0.0
    %216 = vmatpush.msra.mxu0 0.0
    %217 = vmatpush.msra.mxu0 0.0
    %218 = vmatpush.msra.mxu0 0.0
    %219 = vmatpush.msra.mxu0 0.0
    %220 = vmatpush.msra.mxu0 0.0
    %221 = vmatpush.msra.mxu0 0.0
    %222 = vmatpush.msra.mxu0 0.0
    %223 = vmatpush.msra.mxu0 0.0
    %224 = vmatpush.msra.mxu0 0.0
    %225 = vmatpush.msra.mxu0 0.0
    %226 = vmatpush.msra.mxu0 %v199
    %227 = vmatpush.msra.mxu0 %v198
    %228 = vmatpush.msra.mxu0 %v197
    %229 = vmatpush.msra.mxu0 %v196
    %230 = vmatmul.f32.gmra.mxu0 %v212
    %v231 = vpop.f32.mrf.mxu0
    %v232 = vadd.f32 0.0, %v231
    %233 = vdwg.mxu0
    %234 = vmatpush.msra.mxu0 0.0
    %235 = vmatpush.msra.mxu0 0.0
    %236 = vmatpush.msra.mxu0 0.0
    %237 = vmatpush.msra.mxu0 0.0
    %238 = vmatpush.msra.mxu0 0.0
    %239 = vmatpush.msra.mxu0 0.0
    %240 = vmatpush.msra.mxu0 0.0
    %241 = vmatpush.msra.mxu0 0.0
    %242 = vmatpush.msra.mxu0 0.0
    %243 = vmatpush.msra.mxu0 0.0
    %244 = vmatpush.msra.mxu0 0.0
    %245 = vmatpush.msra.mxu0 0.0
    %246 = vmatpush.msra.mxu0 %v204
    %247 = vmatpush.msra.mxu0 %v203
    %248 = vmatpush.msra.mxu0 %v202
    %249 = vmatpush.msra.mxu0 %v201
    %250 = vmatmul.f32.gmra.mxu0 %v212
    %v251 = vpop.f32.mrf.mxu0
    %v252 = vadd.f32 0.0, %v251
    %253 = vdwg.mxu0
    %v255 = vperm.slane %v210, 0
    %257 = vmatpush.msra.mxu0 0.0
    %258 = vmatpush.msra.mxu0 0.0
    %259 = vmatpush.msra.mxu0 0.0
    %260 = vmatpush.msra.mxu0 0.0
    %261 = vmatpush.msra.mxu0 0.0
    %262 = vmatpush.msra.mxu0 0.0
    %263 = vmatpush.msra.mxu0 0.0
    %264 = vmatpush.msra.mxu0 0.0
    %265 = vmatpush.msra.mxu0 0.0
    %266 = vmatpush.msra.mxu0 0.0
    %267 = vmatpush.msra.mxu0 0.0
    %268 = vmatpush.msra.mxu0 0.0
    %269 = vmatpush.msra.mxu0 %v209
    %270 = vmatpush.msra.mxu0 %v208
    %271 = vmatpush.msra.mxu0 %v207
    %272 = vmatpush.msra.mxu0 %v206
    %273 = vmatmul.f32.gmra.mxu0 %v212
    %v274 = vpop.f32.mrf.mxu0
    %v275 = vadd.f32 %v255, %v274
    %276 = vdwg.mxu0
    %v278 = vrot.slane %v232, 1
    %v281 = vadd.f32 %v125, %v232
    %v282 = vadd.f32 %v128, %v278
    %v283 = vxor.u32 %v281, 2147483648
    %v284 = vxor.u32 %v282, 2147483648
    %v285 = vmul.f32 %v283, 1.442695
    %v286 = vpow.pop %v285
    %v287 = vmul.f32 %v284, 1.442695
    %v288 = vpow.pop %v287
    %v289 = vadd.f32 %v286, 1.0
    %v290 = vadd.f32 %v288, 1.0
    %v291 = vrcp.pop %v289
    %v292 = vmul.f32 %v289, %v291
    %v293 = vsub.f32 1.0, %v292
    %v294 = vmul.f32 %v291, %v293
    %v295 = vadd.f32 %v291, %v294
    %vm296 = vweird.f32 %v289
    %vm297 = vweird.f32 %v291
    %vm298 = vmor %vm296, %vm297
    %v299 = vsel %vm298, %v291, %v295
    %v300 = vand.u32 2147483647, %v289
    %vm301 = vcmp.eq.f32.partialorder %v300, 8.507059e+37
    %v302 = vand.u32 %v289, 2147483648
    %v303 = vor.u32 1.1754944e-38, %v302
    %v304 = vsel %vm301, %v303, %v299
    %v305 = vmul.f32 1.0, %v304
    %v306 = vrcp.pop %v290
    %v307 = vmul.f32 %v290, %v306
    %v308 = vsub.f32 1.0, %v307
    %v309 = vmul.f32 %v306, %v308
    %v310 = vadd.f32 %v306, %v309
    %vm311 = vweird.f32 %v290
    %vm312 = vweird.f32 %v306
    %vm313 = vmor %vm311, %vm312
    %v314 = vsel %vm313, %v306, %v310
    %v315 = vand.u32 2147483647, %v290
    %vm316 = vcmp.eq.f32.partialorder %v315, 8.507059e+37
    %v317 = vand.u32 %v290, 2147483648
    %v318 = vor.u32 1.1754944e-38, %v317
    %v319 = vsel %vm316, %v318, %v314
    %v320 = vmul.f32 1.0, %v319
    %v322 = vrot.slane %v252, 1
    %v325 = vadd.f32 %v158, %v252
    %v326 = vadd.f32 %v161, %v322
    %v327 = vxor.u32 %v325, 2147483648
    %v328 = vxor.u32 %v326, 2147483648
    %v329 = vmul.f32 %v327, 1.442695
    %v330 = vpow.pop %v329
    %v331 = vmul.f32 %v328, 1.442695
    %v332 = vpow.pop %v331
    %v333 = vadd.f32 %v330, 1.0
    %v334 = vadd.f32 %v332, 1.0
    %v335 = vrcp.pop %v333
    %v336 = vmul.f32 %v333, %v335
    %v337 = vsub.f32 1.0, %v336
    %v338 = vmul.f32 %v335, %v337
    %v339 = vadd.f32 %v335, %v338
    %vm340 = vweird.f32 %v333
    %vm341 = vweird.f32 %v335
    %vm342 = vmor %vm340, %vm341
    %v343 = vsel %vm342, %v335, %v339
    %v344 = vand.u32 2147483647, %v333
    %vm345 = vcmp.eq.f32.partialorder %v344, 8.507059e+37
    %v346 = vand.u32 %v333, 2147483648
    %v347 = vor.u32 1.1754944e-38, %v346
    %v348 = vsel %vm345, %v347, %v343
    %v349 = vmul.f32 1.0, %v348
    %v350 = vrcp.pop %v334
    %v351 = vmul.f32 %v334, %v350
    %v352 = vsub.f32 1.0, %v351
    %v353 = vmul.f32 %v350, %v352
    %v354 = vadd.f32 %v350, %v353
    %vm355 = vweird.f32 %v334
    %vm356 = vweird.f32 %v350
    %vm357 = vmor %vm355, %vm356
    %v358 = vsel %vm357, %v350, %v354
    %v359 = vand.u32 2147483647, %v334
    %vm360 = vcmp.eq.f32.partialorder %v359, 8.507059e+37
    %v361 = vand.u32 %v334, 2147483648
    %v362 = vor.u32 1.1754944e-38, %v361
    %v363 = vsel %vm360, %v362, %v358
    %v364 = vmul.f32 1.0, %v363
    %v366 = vrot.slane %v275, 1
    %v369 = vmul.f32 %v305, %v275
    %v370 = vmul.f32 %v320, %v366
    %v371 = vadd.f32 %v191, %v369
    %v372 = vadd.f32 %v194, %v370
    %v373 = vtanh.pop %v371
    %v374 = vtanh.pop %v372
    %v375 = vsub.f32 1.0, %v349
    %v376 = vsub.f32 1.0, %v364
    %v377 = vmul.f32 %v375, %v373
    %v378 = vmul.f32 %v376, %v374
    %v379 = vmul.f32 %v349, 0.0
    %v380 = vmul.f32 %v364, 0.0
    %v381 = vadd.f32 %v377, %v379
    %v382 = vadd.f32 %v378, %v380
    %v383 = vadd.f32 %v381, %v90
    %v384 = vadd.f32 %v382, %v91
    %vm385 = vcmask 253952
    %386 = vst.msk [vmem:[#allocation10] sm:$0x1] %vm385, %v383
    %387 = vst.msk [vmem:[#allocation10 + $0x8] sm:$0x1] %vm385, %v384
    %v390 = vrot.slane %v382, 7
    %vm391 = vcmask 1041409
    %v392 = vsel %vm391, %v390, %v381
    %v393 = vsel %vm100, %v392, 0
    %395 = vmatpush.msra.mxu0 0.0
    %396 = vmatpush.msra.mxu0 0.0
    %397 = vmatpush.msra.mxu0 0.0
    %398 = vmatpush.msra.mxu0 0.0
    %399 = vmatpush.msra.mxu0 0.0
    %400 = vmatpush.msra.mxu0 0.0
    %401 = vmatpush.msra.mxu0 0.0
    %402 = vmatpush.msra.mxu0 0.0
    %403 = vmatpush.msra.mxu0 0.0
    %404 = vmatpush.msra.mxu0 0.0
    %405 = vmatpush.msra.mxu0 0.0
    %406 = vmatpush.msra.mxu0 0.0
    %407 = vmatpush.msra.mxu0 %v199
    %408 = vmatpush.msra.mxu0 %v198
    %409 = vmatpush.msra.mxu0 %v197
    %410 = vmatpush.msra.mxu0 %v196
    %411 = vmatmul.f32.gmra.mxu0 %v393
    %v412 = vpop.f32.mrf.mxu0
    %v413 = vadd.f32 0.0, %v412
    %414 = vdwg.mxu0
    %415 = vmatpush.msra.mxu0 0.0
    %416 = vmatpush.msra.mxu0 0.0
    %417 = vmatpush.msra.mxu0 0.0
    %418 = vmatpush.msra.mxu0 0.0
    %419 = vmatpush.msra.mxu0 0.0
    %420 = vmatpush.msra.mxu0 0.0
    %421 = vmatpush.msra.mxu0 0.0
    %422 = vmatpush.msra.mxu0 0.0
    %423 = vmatpush.msra.mxu0 0.0
    %424 = vmatpush.msra.mxu0 0.0
    %425 = vmatpush.msra.mxu0 0.0
    %426 = vmatpush.msra.mxu0 0.0
    %427 = vmatpush.msra.mxu0 %v204
    %428 = vmatpush.msra.mxu0 %v203
    %429 = vmatpush.msra.mxu0 %v202
    %430 = vmatpush.msra.mxu0 %v201
    %431 = vmatmul.f32.gmra.mxu0 %v393
    %v432 = vpop.f32.mrf.mxu0
    %v433 = vadd.f32 0.0, %v432
    %434 = vdwg.mxu0
    %435 = vmatpush.msra.mxu0 0.0
    %436 = vmatpush.msra.mxu0 0.0
    %437 = vmatpush.msra.mxu0 0.0
    %438 = vmatpush.msra.mxu0 0.0
    %439 = vmatpush.msra.mxu0 0.0
    %440 = vmatpush.msra.mxu0 0.0
    %441 = vmatpush.msra.mxu0 0.0
    %442 = vmatpush.msra.mxu0 0.0
    %443 = vmatpush.msra.mxu0 0.0
    %444 = vmatpush.msra.mxu0 0.0
    %445 = vmatpush.msra.mxu0 0.0
    %446 = vmatpush.msra.mxu0 0.0
    %447 = vmatpush.msra.mxu0 %v209
    %448 = vmatpush.msra.mxu0 %v208
    %449 = vmatpush.msra.mxu0 %v207
    %450 = vmatpush.msra.mxu0 %v206
    %451 = vmatmul.f32.gmra.mxu0 %v393
    %v452 = vpop.f32.mrf.mxu0
    %v453 = vadd.f32 %v255, %v452
    %454 = vdwg.mxu0
    %v456 = vrot.slane %v413, 7
    %v459 = vadd.f32 %v125, %v456
    %v460 = vadd.f32 %v128, %v413
    %v461 = vxor.u32 %v459, 2147483648
    %v462 = vxor.u32 %v460, 2147483648
    %v463 = vmul.f32 %v461, 1.442695
    %v464 = vpow.pop %v463
    %v465 = vmul.f32 %v462, 1.442695
    %v466 = vpow.pop %v465
    %v467 = vadd.f32 %v464, 1.0
    %v468 = vadd.f32 %v466, 1.0
    %v469 = vrcp.pop %v467
    %v470 = vmul.f32 %v467, %v469
    %v471 = vsub.f32 1.0, %v470
    %v472 = vmul.f32 %v469, %v471
    %v473 = vadd.f32 %v469, %v472
    %vm474 = vweird.f32 %v467
    %vm475 = vweird.f32 %v469
    %vm476 = vmor %vm474, %vm475
    %v477 = vsel %vm476, %v469, %v473
    %v478 = vand.u32 2147483647, %v467
    %vm479 = vcmp.eq.f32.partialorder %v478, 8.507059e+37
    %v480 = vand.u32 %v467, 2147483648
    %v481 = vor.u32 1.1754944e-38, %v480
    %v482 = vsel %vm479, %v481, %v477
    %v483 = vmul.f32 1.0, %v482
    %v484 = vrcp.pop %v468
    %v485 = vmul.f32 %v468, %v484
    %v486 = vsub.f32 1.0, %v485
    %v487 = vmul.f32 %v484, %v486
    %v488 = vadd.f32 %v484, %v487
    %vm489 = vweird.f32 %v468
    %vm490 = vweird.f32 %v484
    %vm491 = vmor %vm489, %vm490
    %v492 = vsel %vm491, %v484, %v488
    %v493 = vand.u32 2147483647, %v468
    %vm494 = vcmp.eq.f32.partialorder %v493, 8.507059e+37
    %v495 = vand.u32 %v468, 2147483648
    %v496 = vor.u32 1.1754944e-38, %v495
    %v497 = vsel %vm494, %v496, %v492
    %v498 = vmul.f32 1.0, %v497
    %v500 = vrot.slane %v433, 7
    %v503 = vadd.f32 %v158, %v500
    %v504 = vadd.f32 %v161, %v433
    %v505 = vxor.u32 %v503, 2147483648
    %v506 = vxor.u32 %v504, 2147483648
    %v507 = vmul.f32 %v505, 1.442695
    %v508 = vpow.pop %v507
    %v509 = vmul.f32 %v506, 1.442695
    %v510 = vpow.pop %v509
    %v511 = vadd.f32 %v508, 1.0
    %v512 = vadd.f32 %v510, 1.0
    %v513 = vrcp.pop %v511
    %v514 = vmul.f32 %v511, %v513
    %v515 = vsub.f32 1.0, %v514
    %v516 = vmul.f32 %v513, %v515
    %v517 = vadd.f32 %v513, %v516
    %vm518 = vweird.f32 %v511
    %vm519 = vweird.f32 %v513
    %vm520 = vmor %vm518, %vm519
    %v521 = vsel %vm520, %v513, %v517
    %v522 = vand.u32 2147483647, %v511
    %vm523 = vcmp.eq.f32.partialorder %v522, 8.507059e+37
    %v524 = vand.u32 %v511, 2147483648
    %v525 = vor.u32 1.1754944e-38, %v524
    %v526 = vsel %vm523, %v525, %v521
    %v527 = vmul.f32 1.0, %v526
    %v528 = vrcp.pop %v512
    %v529 = vmul.f32 %v512, %v528
    %v530 = vsub.f32 1.0, %v529
    %v531 = vmul.f32 %v528, %v530
    %v532 = vadd.f32 %v528, %v531
    %vm533 = vweird.f32 %v512
    %vm534 = vweird.f32 %v528
    %vm535 = vmor %vm533, %vm534
    %v536 = vsel %vm535, %v528, %v532
    %v537 = vand.u32 2147483647, %v512
    %vm538 = vcmp.eq.f32.partialorder %v537, 8.507059e+37
    %v539 = vand.u32 %v512, 2147483648
    %v540 = vor.u32 1.1754944e-38, %v539
    %v541 = vsel %vm538, %v540, %v536
    %v542 = vmul.f32 1.0, %v541
    %v544 = vrot.slane %v453, 7
    %v547 = vmul.f32 %v483, %v544
    %v548 = vmul.f32 %v498, %v453
    %v549 = vadd.f32 %v191, %v547
    %v550 = vadd.f32 %v194, %v548
    %v551 = vtanh.pop %v549
    %v552 = vtanh.pop %v550
    %v553 = vsub.f32 1.0, %v527
    %v554 = vsub.f32 1.0, %v542
    %v555 = vmul.f32 %v553, %v551
    %v556 = vmul.f32 %v554, %v552
    %v557 = vrot.slane %v381, 7
    %v560 = vmul.f32 %v527, %v557
    %v561 = vmul.f32 %v542, %v390
    %v562 = vadd.f32 %v555, %v560
    %v563 = vadd.f32 %v556, %v561
    %v564 = vadd.f32 %v562, %v90
    %v565 = vadd.f32 %v563, %v91
    %vm566 = vcmask 254977
    %567 = vst.msk [vmem:[#allocation10] sm:$0x2] %vm566, %v564
    %568 = vst.msk [vmem:[#allocation10 + $0x8] sm:$0x2] %vm566, %v565
    %v571 = vrot.slane %v562, 1
    %v572 = vsel %vm391, %v563, %v571
    %v573 = vsel %vm100, %v572, 0
    %575 = vmatpush.msra.mxu0 0.0
    %576 = vmatpush.msra.mxu0 0.0
    %577 = vmatpush.msra.mxu0 0.0
    %578 = vmatpush.msra.mxu0 0.0
    %579 = vmatpush.msra.mxu0 0.0
    %580 = vmatpush.msra.mxu0 0.0
    %581 = vmatpush.msra.mxu0 0.0
    %582 = vmatpush.msra.mxu0 0.0
    %583 = vmatpush.msra.mxu0 0.0
    %584 = vmatpush.msra.mxu0 0.0
    %585 = vmatpush.msra.mxu0 0.0
    %586 = vmatpush.msra.mxu0 0.0
    %587 = vmatpush.msra.mxu0 %v199
    %588 = vmatpush.msra.mxu0 %v198
    %589 = vmatpush.msra.mxu0 %v197
    %590 = vmatpush.msra.mxu0 %v196
    %591 = vmatmul.f32.gmra.mxu0 %v573
    %v592 = vpop.f32.mrf.mxu0
    %v593 = vadd.f32 0.0, %v592
    %594 = vdwg.mxu0
    %595 = vmatpush.msra.mxu0 0.0
    %596 = vmatpush.msra.mxu0 0.0
    %597 = vmatpush.msra.mxu0 0.0
    %598 = vmatpush.msra.mxu0 0.0
    %599 = vmatpush.msra.mxu0 0.0
    %600 = vmatpush.msra.mxu0 0.0
    %601 = vmatpush.msra.mxu0 0.0
    %602 = vmatpush.msra.mxu0 0.0
    %603 = vmatpush.msra.mxu0 0.0
    %604 = vmatpush.msra.mxu0 0.0
    %605 = vmatpush.msra.mxu0 0.0
    %606 = vmatpush.msra.mxu0 0.0
    %607 = vmatpush.msra.mxu0 %v204
    %608 = vmatpush.msra.mxu0 %v203
    %609 = vmatpush.msra.mxu0 %v202
    %610 = vmatpush.msra.mxu0 %v201
    %611 = vmatmul.f32.gmra.mxu0 %v573
    %v612 = vpop.f32.mrf.mxu0
    %v613 = vadd.f32 0.0, %v612
    %614 = vdwg.mxu0
    %615 = vmatpush.msra.mxu0 0.0
    %616 = vmatpush.msra.mxu0 0.0
    %617 = vmatpush.msra.mxu0 0.0
    %618 = vmatpush.msra.mxu0 0.0
    %619 = vmatpush.msra.mxu0 0.0
    %620 = vmatpush.msra.mxu0 0.0
    %621 = vmatpush.msra.mxu0 0.0
    %622 = vmatpush.msra.mxu0 0.0
    %623 = vmatpush.msra.mxu0 0.0
    %624 = vmatpush.msra.mxu0 0.0
    %625 = vmatpush.msra.mxu0 0.0
    %626 = vmatpush.msra.mxu0 0.0
    %627 = vmatpush.msra.mxu0 %v209
    %628 = vmatpush.msra.mxu0 %v208
    %629 = vmatpush.msra.mxu0 %v207
    %630 = vmatpush.msra.mxu0 %v206
    %631 = vmatmul.f32.gmra.mxu0 %v573
    %v632 = vpop.f32.mrf.mxu0
    %v633 = vadd.f32 %v255, %v632
    %634 = vdwg.mxu0
    %v636 = vrot.slane %v593, 6
    %v637 = vrot.slane %v593, 7
    %v640 = vadd.f32 %v125, %v636
    %v641 = vadd.f32 %v128, %v637
    %v642 = vxor.u32 %v640, 2147483648
    %v643 = vxor.u32 %v641, 2147483648
    %v644 = vmul.f32 %v642, 1.442695
    %v645 = vpow.pop %v644
    %v646 = vmul.f32 %v643, 1.442695
    %v647 = vpow.pop %v646
    %v648 = vadd.f32 %v645, 1.0
    %v649 = vadd.f32 %v647, 1.0
    %v650 = vrcp.pop %v648
    %v651 = vmul.f32 %v648, %v650
    %v652 = vsub.f32 1.0, %v651
    %v653 = vmul.f32 %v650, %v652
    %v654 = vadd.f32 %v650, %v653
    %vm655 = vweird.f32 %v648
    %vm656 = vweird.f32 %v650
    %vm657 = vmor %vm655, %vm656
    %v658 = vsel %vm657, %v650, %v654
    %v659 = vand.u32 2147483647, %v648
    %vm660 = vcmp.eq.f32.partialorder %v659, 8.507059e+37
    %v661 = vand.u32 %v648, 2147483648
    %v662 = vor.u32 1.1754944e-38, %v661
    %v663 = vsel %vm660, %v662, %v658
    %v664 = vmul.f32 1.0, %v663
    %v665 = vrcp.pop %v649
    %v666 = vmul.f32 %v649, %v665
    %v667 = vsub.f32 1.0, %v666
    %v668 = vmul.f32 %v665, %v667
    %v669 = vadd.f32 %v665, %v668
    %vm670 = vweird.f32 %v649
    %vm671 = vweird.f32 %v665
    %vm672 = vmor %vm670, %vm671
    %v673 = vsel %vm672, %v665, %v669
    %v674 = vand.u32 2147483647, %v649
    %vm675 = vcmp.eq.f32.partialorder %v674, 8.507059e+37
    %v676 = vand.u32 %v649, 2147483648
    %v677 = vor.u32 1.1754944e-38, %v676
    %v678 = vsel %vm675, %v677, %v673
    %v679 = vmul.f32 1.0, %v678
    %v681 = vrot.slane %v613, 6
    %v682 = vrot.slane %v613, 7
    %v685 = vadd.f32 %v158, %v681
    %v686 = vadd.f32 %v161, %v682
    %v687 = vxor.u32 %v685, 2147483648
    %v688 = vxor.u32 %v686, 2147483648
    %v689 = vmul.f32 %v687, 1.442695
    %v690 = vpow.pop %v689
    %v691 = vmul.f32 %v688, 1.442695
    %v692 = vpow.pop %v691
    %v693 = vadd.f32 %v690, 1.0
    %v694 = vadd.f32 %v692, 1.0
    %v695 = vrcp.pop %v693
    %v696 = vmul.f32 %v693, %v695
    %v697 = vsub.f32 1.0, %v696
    %v698 = vmul.f32 %v695, %v697
    %v699 = vadd.f32 %v695, %v698
    %vm700 = vweird.f32 %v693
    %vm701 = vweird.f32 %v695
    %vm702 = vmor %vm700, %vm701
    %v703 = vsel %vm702, %v695, %v699
    %v704 = vand.u32 2147483647, %v693
    %vm705 = vcmp.eq.f32.partialorder %v704, 8.507059e+37
    %v706 = vand.u32 %v693, 2147483648
    %v707 = vor.u32 1.1754944e-38, %v706
    %v708 = vsel %vm705, %v707, %v703
    %v709 = vmul.f32 1.0, %v708
    %v710 = vrcp.pop %v694
    %v711 = vmul.f32 %v694, %v710
    %v712 = vsub.f32 1.0, %v711
    %v713 = vmul.f32 %v710, %v712
    %v714 = vadd.f32 %v710, %v713
    %vm715 = vweird.f32 %v694
    %vm716 = vweird.f32 %v710
    %vm717 = vmor %vm715, %vm716
    %v718 = vsel %vm717, %v710, %v714
    %v719 = vand.u32 2147483647, %v694
    %vm720 = vcmp.eq.f32.partialorder %v719, 8.507059e+37
    %v721 = vand.u32 %v694, 2147483648
    %v722 = vor.u32 1.1754944e-38, %v721
    %v723 = vsel %vm720, %v722, %v718
    %v724 = vmul.f32 1.0, %v723
    %v726 = vrot.slane %v633, 6
    %v727 = vrot.slane %v633, 7
    %v730 = vmul.f32 %v664, %v726
    %v731 = vmul.f32 %v679, %v727
    %v732 = vadd.f32 %v191, %v730
    %v733 = vadd.f32 %v194, %v731
    %v734 = vtanh.pop %v732
    %v735 = vtanh.pop %v733
    %v736 = vsub.f32 1.0, %v709
    %v737 = vsub.f32 1.0, %v724
    %v738 = vmul.f32 %v736, %v734
    %v739 = vmul.f32 %v737, %v735
    %v740 = vrot.slane %v562, 7
    %v741 = vrot.slane %v563, 7
    %v744 = vmul.f32 %v709, %v740
    %v745 = vmul.f32 %v724, %v741
    %v746 = vadd.f32 %v738, %v744
    %v747 = vadd.f32 %v739, %v745
    %v748 = vadd.f32 %v746, %v90
    %v749 = vadd.f32 %v747, %v91
    %vm750 = vcmask 256002
    %751 = vst.msk [vmem:[#allocation10] sm:$0x4] %vm750, %v748
    %752 = vst.msk [vmem:[#allocation10 + $0x8] sm:$0x4] %vm750, %v749
    %v755 = vrot.slane %v746, 2
    %v756 = vrot.slane %v747, 1
    %v757 = vsel %vm391, %v756, %v755
    %v758 = vsel %vm100, %v757, 0
    %760 = vmatpush.msra.mxu0 0.0
    %761 = vmatpush.msra.mxu0 0.0
    %762 = vmatpush.msra.mxu0 0.0
    %763 = vmatpush.msra.mxu0 0.0
    %764 = vmatpush.msra.mxu0 0.0
    %765 = vmatpush.msra.mxu0 0.0
    %766 = vmatpush.msra.mxu0 0.0
    %767 = vmatpush.msra.mxu0 0.0
    %768 = vmatpush.msra.mxu0 0.0
    %769 = vmatpush.msra.mxu0 0.0
    %770 = vmatpush.msra.mxu0 0.0
    %771 = vmatpush.msra.mxu0 0.0
    %772 = vmatpush.msra.mxu0 %v199
    %773 = vmatpush.msra.mxu0 %v198
    %774 = vmatpush.msra.mxu0 %v197
    %775 = vmatpush.msra.mxu0 %v196
    %776 = vmatmul.f32.gmra.mxu0 %v758
    %v777 = vpop.f32.mrf.mxu0
    %v778 = vadd.f32 0.0, %v777
    %779 = vdwg.mxu0
    %780 = vmatpush.msra.mxu0 0.0
    %781 = vmatpush.msra.mxu0 0.0
    %782 = vmatpush.msra.mxu0 0.0
    %783 = vmatpush.msra.mxu0 0.0
    %784 = vmatpush.msra.mxu0 0.0
    %785 = vmatpush.msra.mxu0 0.0
    %786 = vmatpush.msra.mxu0 0.0
    %787 = vmatpush.msra.mxu0 0.0
    %788 = vmatpush.msra.mxu0 0.0
    %789 = vmatpush.msra.mxu0 0.0
    %790 = vmatpush.msra.mxu0 0.0
    %791 = vmatpush.msra.mxu0 0.0
    %792 = vmatpush.msra.mxu0 %v204
    %793 = vmatpush.msra.mxu0 %v203
    %794 = vmatpush.msra.mxu0 %v202
    %795 = vmatpush.msra.mxu0 %v201
    %796 = vmatmul.f32.gmra.mxu0 %v758
    %v797 = vpop.f32.mrf.mxu0
    %v798 = vadd.f32 0.0, %v797
    %799 = vdwg.mxu0
    %800 = vmatpush.msra.mxu0 0.0
    %801 = vmatpush.msra.mxu0 0.0
    %802 = vmatpush.msra.mxu0 0.0
    %803 = vmatpush.msra.mxu0 0.0
    %804 = vmatpush.msra.mxu0 0.0
    %805 = vmatpush.msra.mxu0 0.0
    %806 = vmatpush.msra.mxu0 0.0
    %807 = vmatpush.msra.mxu0 0.0
    %808 = vmatpush.msra.mxu0 0.0
    %809 = vmatpush.msra.mxu0 0.0
    %810 = vmatpush.msra.mxu0 0.0
    %811 = vmatpush.msra.mxu0 0.0
    %812 = vmatpush.msra.mxu0 %v209
    %813 = vmatpush.msra.mxu0 %v208
    %814 = vmatpush.msra.mxu0 %v207
    %815 = vmatpush.msra.mxu0 %v206
    %816 = vmatmul.f32.gmra.mxu0 %v758
    %v817 = vpop.f32.mrf.mxu0
    %v818 = vadd.f32 %v255, %v817
    %819 = vdwg.mxu0
    %v821 = vrot.slane %v778, 5
    %v822 = vrot.slane %v778, 6
    %v825 = vadd.f32 %v125, %v821
    %v826 = vadd.f32 %v128, %v822
    %v827 = vxor.u32 %v825, 2147483648
    %v828 = vxor.u32 %v826, 2147483648
    %v829 = vmul.f32 %v827, 1.442695
    %v830 = vpow.pop %v829
    %v831 = vmul.f32 %v828, 1.442695
    %v832 = vpow.pop %v831
    %v833 = vadd.f32 %v830, 1.0
    %v834 = vadd.f32 %v832, 1.0
    %v835 = vrcp.pop %v833
    %v836 = vmul.f32 %v833, %v835
    %v837 = vsub.f32 1.0, %v836
    %v838 = vmul.f32 %v835, %v837
    %v839 = vadd.f32 %v835, %v838
    %vm840 = vweird.f32 %v833
    %vm841 = vweird.f32 %v835
    %vm842 = vmor %vm840, %vm841
    %v843 = vsel %vm842, %v835, %v839
    %v844 = vand.u32 2147483647, %v833
    %vm845 = vcmp.eq.f32.partialorder %v844, 8.507059e+37
    %v846 = vand.u32 %v833, 2147483648
    %v847 = vor.u32 1.1754944e-38, %v846
    %v848 = vsel %vm845, %v847, %v843
    %v849 = vmul.f32 1.0, %v848
    %v850 = vrcp.pop %v834
    %v851 = vmul.f32 %v834, %v850
    %v852 = vsub.f32 1.0, %v851
    %v853 = vmul.f32 %v850, %v852
    %v854 = vadd.f32 %v850, %v853
    %vm855 = vweird.f32 %v834
    %vm856 = vweird.f32 %v850
    %vm857 = vmor %vm855, %vm856
    %v858 = vsel %vm857, %v850, %v854
    %v859 = vand.u32 2147483647, %v834
    %vm860 = vcmp.eq.f32.partialorder %v859, 8.507059e+37
    %v861 = vand.u32 %v834, 2147483648
    %v862 = vor.u32 1.1754944e-38, %v861
    %v863 = vsel %vm860, %v862, %v858
    %v864 = vmul.f32 1.0, %v863
    %v866 = vrot.slane %v798, 5
    %v867 = vrot.slane %v798, 6
    %v870 = vadd.f32 %v158, %v866
    %v871 = vadd.f32 %v161, %v867
    %v872 = vxor.u32 %v870, 2147483648
    %v873 = vxor.u32 %v871, 2147483648
    %v874 = vmul.f32 %v872, 1.442695
    %v875 = vpow.pop %v874
    %v876 = vmul.f32 %v873, 1.442695
    %v877 = vpow.pop %v876
    %v878 = vadd.f32 %v875, 1.0
    %v879 = vadd.f32 %v877, 1.0
    %v880 = vrcp.pop %v878
    %v881 = vmul.f32 %v878, %v880
    %v882 = vsub.f32 1.0, %v881
    %v883 = vmul.f32 %v880, %v882
    %v884 = vadd.f32 %v880, %v883
    %vm885 = vweird.f32 %v878
    %vm886 = vweird.f32 %v880
    %vm887 = vmor %vm885, %vm886
    %v888 = vsel %vm887, %v880, %v884
    %v889 = vand.u32 2147483647, %v878
    %vm890 = vcmp.eq.f32.partialorder %v889, 8.507059e+37
    %v891 = vand.u32 %v878, 2147483648
    %v892 = vor.u32 1.1754944e-38, %v891
    %v893 = vsel %vm890, %v892, %v888
    %v894 = vmul.f32 1.0, %v893
    %v895 = vrcp.pop %v879
    %v896 = vmul.f32 %v879, %v895
    %v897 = vsub.f32 1.0, %v896
    %v898 = vmul.f32 %v895, %v897
    %v899 = vadd.f32 %v895, %v898
    %vm900 = vweird.f32 %v879
    %vm901 = vweird.f32 %v895
    %vm902 = vmor %vm900, %vm901
    %v903 = vsel %vm902, %v895, %v899
    %v904 = vand.u32 2147483647, %v879
    %vm905 = vcmp.eq.f32.partialorder %v904, 8.507059e+37
    %v906 = vand.u32 %v879, 2147483648
    %v907 = vor.u32 1.1754944e-38, %v906
    %v908 = vsel %vm905, %v907, %v903
    %v909 = vmul.f32 1.0, %v908
    %v911 = vrot.slane %v818, 5
    %v912 = vrot.slane %v818, 6
    %v915 = vmul.f32 %v849, %v911
    %v916 = vmul.f32 %v864, %v912
    %v917 = vadd.f32 %v191, %v915
    %v918 = vadd.f32 %v194, %v916
    %v919 = vtanh.pop %v917
    %v920 = vtanh.pop %v918
    %v921 = vsub.f32 1.0, %v894
    %v922 = vsub.f32 1.0, %v909
    %v923 = vmul.f32 %v921, %v919
    %v924 = vmul.f32 %v922, %v920
    %v925 = vrot.slane %v746, 7
    %v926 = vrot.slane %v747, 7
    %v929 = vmul.f32 %v894, %v925
    %v930 = vmul.f32 %v909, %v926
    %v931 = vadd.f32 %v923, %v929
    %v932 = vadd.f32 %v924, %v930
    %v933 = vadd.f32 %v931, %v90
    %v934 = vadd.f32 %v932, %v91
    %vm935 = vcmask 257027
    %936 = vst.msk [vmem:[#allocation10] sm:$0x8] %vm935, %v933
    %937 = vst.msk [vmem:[#allocation10 + $0x8] sm:$0x8] %vm935, %v934
    %v940 = vrot.slane %v931, 3
    %v941 = vrot.slane %v932, 2
    %v942 = vsel %vm391, %v941, %v940
    %v943 = vsel %vm100, %v942, 0
    %945 = vmatpush.msra.mxu0 0.0
    %946 = vmatpush.msra.mxu0 0.0
    %947 = vmatpush.msra.mxu0 0.0
    %948 = vmatpush.msra.mxu0 0.0
    %949 = vmatpush.msra.mxu0 0.0
    %950 = vmatpush.msra.mxu0 0.0
    %951 = vmatpush.msra.mxu0 0.0
    %952 = vmatpush.msra.mxu0 0.0
    %953 = vmatpush.msra.mxu0 0.0
    %954 = vmatpush.msra.mxu0 0.0
    %955 = vmatpush.msra.mxu0 0.0
    %956 = vmatpush.msra.mxu0 0.0
    %957 = vmatpush.msra.mxu0 %v199
    %958 = vmatpush.msra.mxu0 %v198
    %959 = vmatpush.msra.mxu0 %v197
    %960 = vmatpush.msra.mxu0 %v196
    %961 = vmatmul.f32.gmra.mxu0 %v943
    %v962 = vpop.f32.mrf.mxu0
    %v963 = vadd.f32 0.0, %v962
    %964 = vdwg.mxu0
    %965 = vmatpush.msra.mxu0 0.0
    %966 = vmatpush.msra.mxu0 0.0
    %967 = vmatpush.msra.mxu0 0.0
    %968 = vmatpush.msra.mxu0 0.0
    %969 = vmatpush.msra.mxu0 0.0
    %970 = vmatpush.msra.mxu0 0.0
    %971 = vmatpush.msra.mxu0 0.0
    %972 = vmatpush.msra.mxu0 0.0
    %973 = vmatpush.msra.mxu0 0.0
    %974 = vmatpush.msra.mxu0 0.0
    %975 = vmatpush.msra.mxu0 0.0
    %976 = vmatpush.msra.mxu0 0.0
    %977 = vmatpush.msra.mxu0 %v204
    %978 = vmatpush.msra.mxu0 %v203
    %979 = vmatpush.msra.mxu0 %v202
    %980 = vmatpush.msra.mxu0 %v201
    %981 = vmatmul.f32.gmra.mxu0 %v943
    %v982 = vpop.f32.mrf.mxu0
    %v983 = vadd.f32 0.0, %v982
    %984 = vdwg.mxu0
    %985 = vmatpush.msra.mxu0 0.0
    %986 = vmatpush.msra.mxu0 0.0
    %987 = vmatpush.msra.mxu0 0.0
    %988 = vmatpush.msra.mxu0 0.0
    %989 = vmatpush.msra.mxu0 0.0
    %990 = vmatpush.msra.mxu0 0.0
    %991 = vmatpush.msra.mxu0 0.0
    %992 = vmatpush.msra.mxu0 0.0
    %993 = vmatpush.msra.mxu0 0.0
    %994 = vmatpush.msra.mxu0 0.0
    %995 = vmatpush.msra.mxu0 0.0
    %996 = vmatpush.msra.mxu0 0.0
    %997 = vmatpush.msra.mxu0 %v209
    %998 = vmatpush.msra.mxu0 %v208
    %999 = vmatpush.msra.mxu0 %v207
    %1000 = vmatpush.msra.mxu0 %v206
    %1001 = vmatmul.f32.gmra.mxu0 %v943
    %v1002 = vpop.f32.mrf.mxu0
    %v1003 = vadd.f32 %v255, %v1002
    %1004 = vdwg.mxu0
    %v1006 = vrot.slane %v963, 4
    %v1007 = vrot.slane %v963, 5
    %v1010 = vadd.f32 %v125, %v1006
    %v1011 = vadd.f32 %v128, %v1007
    %v1012 = vxor.u32 %v1010, 2147483648
    %v1013 = vxor.u32 %v1011, 2147483648
    %v1014 = vmul.f32 %v1012, 1.442695
    %v1015 = vpow.pop %v1014
    %v1016 = vmul.f32 %v1013, 1.442695
    %v1017 = vpow.pop %v1016
    %v1018 = vadd.f32 %v1015, 1.0
    %v1019 = vadd.f32 %v1017, 1.0
    %v1020 = vrcp.pop %v1018
    %v1021 = vmul.f32 %v1018, %v1020
    %v1022 = vsub.f32 1.0, %v1021
    %v1023 = vmul.f32 %v1020, %v1022
    %v1024 = vadd.f32 %v1020, %v1023
    %vm1025 = vweird.f32 %v1018
    %vm1026 = vweird.f32 %v1020
    %vm1027 = vmor %vm1025, %vm1026
    %v1028 = vsel %vm1027, %v1020, %v1024
    %v1029 = vand.u32 2147483647, %v1018
    %vm1030 = vcmp.eq.f32.partialorder %v1029, 8.507059e+37
    %v1031 = vand.u32 %v1018, 2147483648
    %v1032 = vor.u32 1.1754944e-38, %v1031
    %v1033 = vsel %vm1030, %v1032, %v1028
    %v1034 = vmul.f32 1.0, %v1033
    %v1035 = vrcp.pop %v1019
    %v1036 = vmul.f32 %v1019, %v1035
    %v1037 = vsub.f32 1.0, %v1036
    %v1038 = vmul.f32 %v1035, %v1037
    %v1039 = vadd.f32 %v1035, %v1038
    %vm1040 = vweird.f32 %v1019
    %vm1041 = vweird.f32 %v1035
    %vm1042 = vmor %vm1040, %vm1041
    %v1043 = vsel %vm1042, %v1035, %v1039
    %v1044 = vand.u32 2147483647, %v1019
    %vm1045 = vcmp.eq.f32.partialorder %v1044, 8.507059e+37
    %v1046 = vand.u32 %v1019, 2147483648
    %v1047 = vor.u32 1.1754944e-38, %v1046
    %v1048 = vsel %vm1045, %v1047, %v1043
    %v1049 = vmul.f32 1.0, %v1048
    %v1051 = vrot.slane %v983, 4
    %v1052 = vrot.slane %v983, 5
    %v1055 = vadd.f32 %v158, %v1051
    %v1056 = vadd.f32 %v161, %v1052
    %v1057 = vxor.u32 %v1055, 2147483648
    %v1058 = vxor.u32 %v1056, 2147483648
    %v1059 = vmul.f32 %v1057, 1.442695
    %v1060 = vpow.pop %v1059
    %v1061 = vmul.f32 %v1058, 1.442695
    %v1062 = vpow.pop %v1061
    %v1063 = vadd.f32 %v1060, 1.0
    %v1064 = vadd.f32 %v1062, 1.0
    %v1065 = vrcp.pop %v1063
    %v1066 = vmul.f32 %v1063, %v1065
    %v1067 = vsub.f32 1.0, %v1066
    %v1068 = vmul.f32 %v1065, %v1067
    %v1069 = vadd.f32 %v1065, %v1068
    %vm1070 = vweird.f32 %v1063
    %vm1071 = vweird.f32 %v1065
    %vm1072 = vmor %vm1070, %vm1071
    %v1073 = vsel %vm1072, %v1065, %v1069
    %v1074 = vand.u32 2147483647, %v1063
    %vm1075 = vcmp.eq.f32.partialorder %v1074, 8.507059e+37
    %v1076 = vand.u32 %v1063, 2147483648
    %v1077 = vor.u32 1.1754944e-38, %v1076
    %v1078 = vsel %vm1075, %v1077, %v1073
    %v1079 = vmul.f32 1.0, %v1078
    %v1080 = vrcp.pop %v1064
    %v1081 = vmul.f32 %v1064, %v1080
    %v1082 = vsub.f32 1.0, %v1081
    %v1083 = vmul.f32 %v1080, %v1082
    %v1084 = vadd.f32 %v1080, %v1083
    %vm1085 = vweird.f32 %v1064
    %vm1086 = vweird.f32 %v1080
    %vm1087 = vmor %vm1085, %vm1086
    %v1088 = vsel %vm1087, %v1080, %v1084
    %v1089 = vand.u32 2147483647, %v1064
    %vm1090 = vcmp.eq.f32.partialorder %v1089, 8.507059e+37
    %v1091 = vand.u32 %v1064, 2147483648
    %v1092 = vor.u32 1.1754944e-38, %v1091
    %v1093 = vsel %vm1090, %v1092, %v1088
    %v1094 = vmul.f32 1.0, %v1093
    %v1096 = vrot.slane %v1003, 4
    %v1097 = vrot.slane %v1003, 5
    %v1100 = vmul.f32 %v1034, %v1096
    %v1101 = vmul.f32 %v1049, %v1097
    %v1102 = vadd.f32 %v191, %v1100
    %v1103 = vadd.f32 %v194, %v1101
    %v1104 = vtanh.pop %v1102
    %v1105 = vtanh.pop %v1103
    %v1106 = vsub.f32 1.0, %v1079
    %v1107 = vsub.f32 1.0, %v1094
    %v1108 = vmul.f32 %v1106, %v1104
    %v1109 = vmul.f32 %v1107, %v1105
    %v1110 = vrot.slane %v931, 7
    %v1111 = vrot.slane %v932, 7
    %v1114 = vmul.f32 %v1079, %v1110
    %v1115 = vmul.f32 %v1094, %v1111
    %v1116 = vadd.f32 %v1108, %v1114
    %v1117 = vadd.f32 %v1109, %v1115
    %v1118 = vadd.f32 %v1116, %v90
    %v1119 = vadd.f32 %v1117, %v91
    %vm1120 = vcmask 258052
    %1121 = vst.msk [vmem:[#allocation10] sm:$0x10] %vm1120, %v1118
    %1122 = vst.msk [vmem:[#allocation10 + $0x8] sm:$0x10] %vm1120, %v1119
    %v1125 = vrot.slane %v1116, 4
    %v1126 = vrot.slane %v1117, 3
    %v1127 = vsel %vm391, %v1126, %v1125
    %v1128 = vsel %vm100, %v1127, 0
    %1130 = vmatpush.msra.mxu0 0.0
    %1131 = vmatpush.msra.mxu0 0.0
    %1132 = vmatpush.msra.mxu0 0.0
    %1133 = vmatpush.msra.mxu0 0.0
    %1134 = vmatpush.msra.mxu0 0.0
    %1135 = vmatpush.msra.mxu0 0.0
    %1136 = vmatpush.msra.mxu0 0.0
    %1137 = vmatpush.msra.mxu0 0.0
    %1138 = vmatpush.msra.mxu0 0.0
    %1139 = vmatpush.msra.mxu0 0.0
    %1140 = vmatpush.msra.mxu0 0.0
    %1141 = vmatpush.msra.mxu0 0.0
    %1142 = vmatpush.msra.mxu0 %v199
    %1143 = vmatpush.msra.mxu0 %v198
    %1144 = vmatpush.msra.mxu0 %v197
    %1145 = vmatpush.msra.mxu0 %v196
    %1146 = vmatmul.f32.gmra.mxu0 %v1128
    %v1147 = vpop.f32.mrf.mxu0
    %v1148 = vadd.f32 0.0, %v1147
    %1149 = vdwg.mxu0
    %1150 = vmatpush.msra.mxu0 0.0
    %1151 = vmatpush.msra.mxu0 0.0
    %1152 = vmatpush.msra.mxu0 0.0
    %1153 = vmatpush.msra.mxu0 0.0
    %1154 = vmatpush.msra.mxu0 0.0
    %1155 = vmatpush.msra.mxu0 0.0
    %1156 = vmatpush.msra.mxu0 0.0
    %1157 = vmatpush.msra.mxu0 0.0
    %1158 = vmatpush.msra.mxu0 0.0
    %1159 = vmatpush.msra.mxu0 0.0
    %1160 = vmatpush.msra.mxu0 0.0
    %1161 = vmatpush.msra.mxu0 0.0
    %1162 = vmatpush.msra.mxu0 %v204
    %1163 = vmatpush.msra.mxu0 %v203
    %1164 = vmatpush.msra.mxu0 %v202
    %1165 = vmatpush.msra.mxu0 %v201
    %1166 = vmatmul.f32.gmra.mxu0 %v1128
    %v1167 = vpop.f32.mrf.mxu0
    %v1168 = vadd.f32 0.0, %v1167
    %1169 = vdwg.mxu0
    %1170 = vmatpush.msra.mxu0 0.0
    %1171 = vmatpush.msra.mxu0 0.0
    %1172 = vmatpush.msra.mxu0 0.0
    %1173 = vmatpush.msra.mxu0 0.0
    %1174 = vmatpush.msra.mxu0 0.0
    %1175 = vmatpush.msra.mxu0 0.0
    %1176 = vmatpush.msra.mxu0 0.0
    %1177 = vmatpush.msra.mxu0 0.0
    %1178 = vmatpush.msra.mxu0 0.0
    %1179 = vmatpush.msra.mxu0 0.0
    %1180 = vmatpush.msra.mxu0 0.0
    %1181 = vmatpush.msra.mxu0 0.0
    %1182 = vmatpush.msra.mxu0 %v209
    %1183 = vmatpush.msra.mxu0 %v208
    %1184 = vmatpush.msra.mxu0 %v207
    %1185 = vmatpush.msra.mxu0 %v206
    %1186 = vmatmul.f32.gmra.mxu0 %v1128
    %v1187 = vpop.f32.mrf.mxu0
    %v1188 = vadd.f32 %v255, %v1187
    %1189 = vdwg.mxu0
    %v1191 = vrot.slane %v1148, 3
    %v1192 = vrot.slane %v1148, 4
    %v1195 = vadd.f32 %v125, %v1191
    %v1196 = vadd.f32 %v128, %v1192
    %v1197 = vxor.u32 %v1195, 2147483648
    %v1198 = vxor.u32 %v1196, 2147483648
    %v1199 = vmul.f32 %v1197, 1.442695
    %v1200 = vpow.pop %v1199
    %v1201 = vmul.f32 %v1198, 1.442695
    %v1202 = vpow.pop %v1201
    %v1203 = vadd.f32 %v1200, 1.0
    %v1204 = vadd.f32 %v1202, 1.0
    %v1205 = vrcp.pop %v1203
    %v1206 = vmul.f32 %v1203, %v1205
    %v1207 = vsub.f32 1.0, %v1206
    %v1208 = vmul.f32 %v1205, %v1207
    %v1209 = vadd.f32 %v1205, %v1208
    %vm1210 = vweird.f32 %v1203
    %vm1211 = vweird.f32 %v1205
    %vm1212 = vmor %vm1210, %vm1211
    %v1213 = vsel %vm1212, %v1205, %v1209
    %v1214 = vand.u32 2147483647, %v1203
    %vm1215 = vcmp.eq.f32.partialorder %v1214, 8.507059e+37
    %v1216 = vand.u32 %v1203, 2147483648
    %v1217 = vor.u32 1.1754944e-38, %v1216
    %v1218 = vsel %vm1215, %v1217, %v1213
    %v1219 = vmul.f32 1.0, %v1218
    %v1220 = vrcp.pop %v1204
    %v1221 = vmul.f32 %v1204, %v1220
    %v1222 = vsub.f32 1.0, %v1221
    %v1223 = vmul.f32 %v1220, %v1222
    %v1224 = vadd.f32 %v1220, %v1223
    %vm1225 = vweird.f32 %v1204
    %vm1226 = vweird.f32 %v1220
    %vm1227 = vmor %vm1225, %vm1226
    %v1228 = vsel %vm1227, %v1220, %v1224
    %v1229 = vand.u32 2147483647, %v1204
    %vm1230 = vcmp.eq.f32.partialorder %v1229, 8.507059e+37
    %v1231 = vand.u32 %v1204, 2147483648
    %v1232 = vor.u32 1.1754944e-38, %v1231
    %v1233 = vsel %vm1230, %v1232, %v1228
    %v1234 = vmul.f32 1.0, %v1233
    %v1236 = vrot.slane %v1168, 3
    %v1237 = vrot.slane %v1168, 4
    %v1240 = vadd.f32 %v158, %v1236
    %v1241 = vadd.f32 %v161, %v1237
    %v1242 = vxor.u32 %v1240, 2147483648
    %v1243 = vxor.u32 %v1241, 2147483648
    %v1244 = vmul.f32 %v1242, 1.442695
    %v1245 = vpow.pop %v1244
    %v1246 = vmul.f32 %v1243, 1.442695
    %v1247 = vpow.pop %v1246
    %v1248 = vadd.f32 %v1245, 1.0
    %v1249 = vadd.f32 %v1247, 1.0
    %v1250 = vrcp.pop %v1248
    %v1251 = vmul.f32 %v1248, %v1250
    %v1252 = vsub.f32 1.0, %v1251
    %v1253 = vmul.f32 %v1250, %v1252
    %v1254 = vadd.f32 %v1250, %v1253
    %vm1255 = vweird.f32 %v1248
    %vm1256 = vweird.f32 %v1250
    %vm1257 = vmor %vm1255, %vm1256
    %v1258 = vsel %vm1257, %v1250, %v1254
    %v1259 = vand.u32 2147483647, %v1248
    %vm1260 = vcmp.eq.f32.partialorder %v1259, 8.507059e+37
    %v1261 = vand.u32 %v1248, 2147483648
    %v1262 = vor.u32 1.1754944e-38, %v1261
    %v1263 = vsel %vm1260, %v1262, %v1258
    %v1264 = vmul.f32 1.0, %v1263
    %v1265 = vrcp.pop %v1249
    %v1266 = vmul.f32 %v1249, %v1265
    %v1267 = vsub.f32 1.0, %v1266
    %v1268 = vmul.f32 %v1265, %v1267
    %v1269 = vadd.f32 %v1265, %v1268
    %vm1270 = vweird.f32 %v1249
    %vm1271 = vweird.f32 %v1265
    %vm1272 = vmor %vm1270, %vm1271
    %v1273 = vsel %vm1272, %v1265, %v1269
    %v1274 = vand.u32 2147483647, %v1249
    %vm1275 = vcmp.eq.f32.partialorder %v1274, 8.507059e+37
    %v1276 = vand.u32 %v1249, 2147483648
    %v1277 = vor.u32 1.1754944e-38, %v1276
    %v1278 = vsel %vm1275, %v1277, %v1273
    %v1279 = vmul.f32 1.0, %v1278
    %v1281 = vrot.slane %v1188, 3
    %v1282 = vrot.slane %v1188, 4
    %v1285 = vmul.f32 %v1219, %v1281
    %v1286 = vmul.f32 %v1234, %v1282
    %v1287 = vadd.f32 %v191, %v1285
    %v1288 = vadd.f32 %v194, %v1286
    %v1289 = vtanh.pop %v1287
    %v1290 = vtanh.pop %v1288
    %v1291 = vsub.f32 1.0, %v1264
    %v1292 = vsub.f32 1.0, %v1279
    %v1293 = vmul.f32 %v1291, %v1289
    %v1294 = vmul.f32 %v1292, %v1290
    %v1295 = vrot.slane %v1116, 7
    %v1296 = vrot.slane %v1117, 7
    %v1299 = vmul.f32 %v1264, %v1295
    %v1300 = vmul.f32 %v1279, %v1296
    %v1301 = vadd.f32 %v1293, %v1299
    %v1302 = vadd.f32 %v1294, %v1300
    %v1303 = vadd.f32 %v1301, %v90
    %v1304 = vadd.f32 %v1302, %v91
    %vm1305 = vcmask 259077
    %1306 = vst.msk [vmem:[#allocation10] sm:$0x20] %vm1305, %v1303
    %1307 = vst.msk [vmem:[#allocation10 + $0x8] sm:$0x20] %vm1305, %v1304
    %v1310 = vrot.slane %v1301, 5
    %v1311 = vrot.slane %v1302, 4
    %v1312 = vsel %vm391, %v1311, %v1310
    %v1313 = vsel %vm100, %v1312, 0
    %1315 = vmatpush.msra.mxu0 0.0
    %1316 = vmatpush.msra.mxu0 0.0
    %1317 = vmatpush.msra.mxu0 0.0
    %1318 = vmatpush.msra.mxu0 0.0
    %1319 = vmatpush.msra.mxu0 0.0
    %1320 = vmatpush.msra.mxu0 0.0
    %1321 = vmatpush.msra.mxu0 0.0
    %1322 = vmatpush.msra.mxu0 0.0
    %1323 = vmatpush.msra.mxu0 0.0
    %1324 = vmatpush.msra.mxu0 0.0
    %1325 = vmatpush.msra.mxu0 0.0
    %1326 = vmatpush.msra.mxu0 0.0
    %1327 = vmatpush.msra.mxu0 %v199
    %1328 = vmatpush.msra.mxu0 %v198
    %1329 = vmatpush.msra.mxu0 %v197
    %1330 = vmatpush.msra.mxu0 %v196
    %1331 = vmatmul.f32.gmra.mxu0 %v1313
    %v1332 = vpop.f32.mrf.mxu0
    %v1333 = vadd.f32 0.0, %v1332
    %1334 = vdwg.mxu0
    %1335 = vmatpush.msra.mxu0 0.0
    %1336 = vmatpush.msra.mxu0 0.0
    %1337 = vmatpush.msra.mxu0 0.0
    %1338 = vmatpush.msra.mxu0 0.0
    %1339 = vmatpush.msra.mxu0 0.0
    %1340 = vmatpush.msra.mxu0 0.0
    %1341 = vmatpush.msra.mxu0 0.0
    %1342 = vmatpush.msra.mxu0 0.0
    %1343 = vmatpush.msra.mxu0 0.0
    %1344 = vmatpush.msra.mxu0 0.0
    %1345 = vmatpush.msra.mxu0 0.0
    %1346 = vmatpush.msra.mxu0 0.0
    %1347 = vmatpush.msra.mxu0 %v204
    %1348 = vmatpush.msra.mxu0 %v203
    %1349 = vmatpush.msra.mxu0 %v202
    %1350 = vmatpush.msra.mxu0 %v201
    %1351 = vmatmul.f32.gmra.mxu0 %v1313
    %v1352 = vpop.f32.mrf.mxu0
    %v1353 = vadd.f32 0.0, %v1352
    %1354 = vdwg.mxu0
    %1355 = vmatpush.msra.mxu0 0.0
    %1356 = vmatpush.msra.mxu0 0.0
    %1357 = vmatpush.msra.mxu0 0.0
    %1358 = vmatpush.msra.mxu0 0.0
    %1359 = vmatpush.msra.mxu0 0.0
    %1360 = vmatpush.msra.mxu0 0.0
    %1361 = vmatpush.msra.mxu0 0.0
    %1362 = vmatpush.msra.mxu0 0.0
    %1363 = vmatpush.msra.mxu0 0.0
    %1364 = vmatpush.msra.mxu0 0.0
    %1365 = vmatpush.msra.mxu0 0.0
    %1366 = vmatpush.msra.mxu0 0.0
    %1367 = vmatpush.msra.mxu0 %v209
    %1368 = vmatpush.msra.mxu0 %v208
    %1369 = vmatpush.msra.mxu0 %v207
    %1370 = vmatpush.msra.mxu0 %v206
    %1371 = vmatmul.f32.gmra.mxu0 %v1313
    %v1372 = vpop.f32.mrf.mxu0
    %v1373 = vadd.f32 %v255, %v1372
    %1374 = vdwg.mxu0
    %v1376 = vrot.slane %v1333, 2
    %v1377 = vrot.slane %v1333, 3
    %v1380 = vadd.f32 %v125, %v1376
    %v1381 = vadd.f32 %v128, %v1377
    %v1382 = vxor.u32 %v1380, 2147483648
    %v1383 = vxor.u32 %v1381, 2147483648
    %v1384 = vmul.f32 %v1382, 1.442695
    %v1385 = vpow.pop %v1384
    %v1386 = vmul.f32 %v1383, 1.442695
    %v1387 = vpow.pop %v1386
    %v1388 = vadd.f32 %v1385, 1.0
    %v1389 = vadd.f32 %v1387, 1.0
    %v1390 = vrcp.pop %v1388
    %v1391 = vmul.f32 %v1388, %v1390
    %v1392 = vsub.f32 1.0, %v1391
    %v1393 = vmul.f32 %v1390, %v1392
    %v1394 = vadd.f32 %v1390, %v1393
    %vm1395 = vweird.f32 %v1388
    %vm1396 = vweird.f32 %v1390
    %vm1397 = vmor %vm1395, %vm1396
    %v1398 = vsel %vm1397, %v1390, %v1394
    %v1399 = vand.u32 2147483647, %v1388
    %vm1400 = vcmp.eq.f32.partialorder %v1399, 8.507059e+37
    %v1401 = vand.u32 %v1388, 2147483648
    %v1402 = vor.u32 1.1754944e-38, %v1401
    %v1403 = vsel %vm1400, %v1402, %v1398
    %v1404 = vmul.f32 1.0, %v1403
    %v1405 = vrcp.pop %v1389
    %v1406 = vmul.f32 %v1389, %v1405
    %v1407 = vsub.f32 1.0, %v1406
    %v1408 = vmul.f32 %v1405, %v1407
    %v1409 = vadd.f32 %v1405, %v1408
    %vm1410 = vweird.f32 %v1389
    %vm1411 = vweird.f32 %v1405
    %vm1412 = vmor %vm1410, %vm1411
    %v1413 = vsel %vm1412, %v1405, %v1409
    %v1414 = vand.u32 2147483647, %v1389
    %vm1415 = vcmp.eq.f32.partialorder %v1414, 8.507059e+37
    %v1416 = vand.u32 %v1389, 2147483648
    %v1417 = vor.u32 1.1754944e-38, %v1416
    %v1418 = vsel %vm1415, %v1417, %v1413
    %v1419 = vmul.f32 1.0, %v1418
    %v1421 = vrot.slane %v1353, 2
    %v1422 = vrot.slane %v1353, 3
    %v1425 = vadd.f32 %v158, %v1421
    %v1426 = vadd.f32 %v161, %v1422
    %v1427 = vxor.u32 %v1425, 2147483648
    %v1428 = vxor.u32 %v1426, 2147483648
    %v1429 = vmul.f32 %v1427, 1.442695
    %v1430 = vpow.pop %v1429
    %v1431 = vmul.f32 %v1428, 1.442695
    %v1432 = vpow.pop %v1431
    %v1433 = vadd.f32 %v1430, 1.0
    %v1434 = vadd.f32 %v1432, 1.0
    %v1435 = vrcp.pop %v1433
    %v1436 = vmul.f32 %v1433, %v1435
    %v1437 = vsub.f32 1.0, %v1436
    %v1438 = vmul.f32 %v1435, %v1437
    %v1439 = vadd.f32 %v1435, %v1438
    %vm1440 = vweird.f32 %v1433
    %vm1441 = vweird.f32 %v1435
    %vm1442 = vmor %vm1440, %vm1441
    %v1443 = vsel %vm1442, %v1435, %v1439
    %v1444 = vand.u32 2147483647, %v1433
    %vm1445 = vcmp.eq.f32.partialorder %v1444, 8.507059e+37
    %v1446 = vand.u32 %v1433, 2147483648
    %v1447 = vor.u32 1.1754944e-38, %v1446
    %v1448 = vsel %vm1445, %v1447, %v1443
    %v1449 = vmul.f32 1.0, %v1448
    %v1450 = vrcp.pop %v1434
    %v1451 = vmul.f32 %v1434, %v1450
    %v1452 = vsub.f32 1.0, %v1451
    %v1453 = vmul.f32 %v1450, %v1452
    %v1454 = vadd.f32 %v1450, %v1453
    %vm1455 = vweird.f32 %v1434
    %vm1456 = vweird.f32 %v1450
    %vm1457 = vmor %vm1455, %vm1456
    %v1458 = vsel %vm1457, %v1450, %v1454
    %v1459 = vand.u32 2147483647, %v1434
    %vm1460 = vcmp.eq.f32.partialorder %v1459, 8.507059e+37
    %v1461 = vand.u32 %v1434, 2147483648
    %v1462 = vor.u32 1.1754944e-38, %v1461
    %v1463 = vsel %vm1460, %v1462, %v1458
    %v1464 = vmul.f32 1.0, %v1463
    %v1466 = vrot.slane %v1373, 2
    %v1467 = vrot.slane %v1373, 3
    %v1470 = vmul.f32 %v1404, %v1466
    %v1471 = vmul.f32 %v1419, %v1467
    %v1472 = vadd.f32 %v191, %v1470
    %v1473 = vadd.f32 %v194, %v1471
    %v1474 = vtanh.pop %v1472
    %v1475 = vtanh.pop %v1473
    %v1476 = vsub.f32 1.0, %v1449
    %v1477 = vsub.f32 1.0, %v1464
    %v1478 = vmul.f32 %v1476, %v1474
    %v1479 = vmul.f32 %v1477, %v1475
    %v1480 = vrot.slane %v1301, 7
    %v1481 = vrot.slane %v1302, 7
    %v1484 = vmul.f32 %v1449, %v1480
    %v1485 = vmul.f32 %v1464, %v1481
    %v1486 = vadd.f32 %v1478, %v1484
    %v1487 = vadd.f32 %v1479, %v1485
    %v1488 = vadd.f32 %v1486, %v90
    %v1489 = vadd.f32 %v1487, %v91
    %vm1490 = vcmask 260102
    %1491 = vst.msk [vmem:[#allocation10] sm:$0x40] %vm1490, %v1488
    %1492 = vst.msk [vmem:[#allocation10 + $0x8] sm:$0x40] %vm1490, %v1489
    %v1495 = vrot.slane %v1486, 6
    %v1496 = vrot.slane %v1487, 5
    %v1497 = vsel %vm391, %v1496, %v1495
    %v1498 = vsel %vm100, %v1497, 0
    %1500 = vmatpush.msra.mxu0 0.0
    %1501 = vmatpush.msra.mxu0 0.0
    %1502 = vmatpush.msra.mxu0 0.0
    %1503 = vmatpush.msra.mxu0 0.0
    %1504 = vmatpush.msra.mxu0 0.0
    %1505 = vmatpush.msra.mxu0 0.0
    %1506 = vmatpush.msra.mxu0 0.0
    %1507 = vmatpush.msra.mxu0 0.0
    %1508 = vmatpush.msra.mxu0 0.0
    %1509 = vmatpush.msra.mxu0 0.0
    %1510 = vmatpush.msra.mxu0 0.0
    %1511 = vmatpush.msra.mxu0 0.0
    %1512 = vmatpush.msra.mxu0 %v199
    %1513 = vmatpush.msra.mxu0 %v198
    %1514 = vmatpush.msra.mxu0 %v197
    %1515 = vmatpush.msra.mxu0 %v196
    %1516 = vmatmul.f32.gmra.mxu0 %v1498
    %v1517 = vpop.f32.mrf.mxu0
    %v1518 = vadd.f32 0.0, %v1517
    %1519 = vdwg.mxu0
    %1520 = vmatpush.msra.mxu0 0.0
    %1521 = vmatpush.msra.mxu0 0.0
    %1522 = vmatpush.msra.mxu0 0.0
    %1523 = vmatpush.msra.mxu0 0.0
    %1524 = vmatpush.msra.mxu0 0.0
    %1525 = vmatpush.msra.mxu0 0.0
    %1526 = vmatpush.msra.mxu0 0.0
    %1527 = vmatpush.msra.mxu0 0.0
    %1528 = vmatpush.msra.mxu0 0.0
    %1529 = vmatpush.msra.mxu0 0.0
    %1530 = vmatpush.msra.mxu0 0.0
    %1531 = vmatpush.msra.mxu0 0.0
    %1532 = vmatpush.msra.mxu0 %v204
    %1533 = vmatpush.msra.mxu0 %v203
    %1534 = vmatpush.msra.mxu0 %v202
    %1535 = vmatpush.msra.mxu0 %v201
    %1536 = vmatmul.f32.gmra.mxu0 %v1498
    %v1537 = vpop.f32.mrf.mxu0
    %v1538 = vadd.f32 0.0, %v1537
    %1539 = vdwg.mxu0
    %1540 = vmatpush.msra.mxu0 0.0
    %1541 = vmatpush.msra.mxu0 0.0
    %1542 = vmatpush.msra.mxu0 0.0
    %1543 = vmatpush.msra.mxu0 0.0
    %1544 = vmatpush.msra.mxu0 0.0
    %1545 = vmatpush.msra.mxu0 0.0
    %1546 = vmatpush.msra.mxu0 0.0
    %1547 = vmatpush.msra.mxu0 0.0
    %1548 = vmatpush.msra.mxu0 0.0
    %1549 = vmatpush.msra.mxu0 0.0
    %1550 = vmatpush.msra.mxu0 0.0
    %1551 = vmatpush.msra.mxu0 0.0
    %1552 = vmatpush.msra.mxu0 %v209
    %1553 = vmatpush.msra.mxu0 %v208
    %1554 = vmatpush.msra.mxu0 %v207
    %1555 = vmatpush.msra.mxu0 %v206
    %1556 = vmatmul.f32.gmra.mxu0 %v1498
    %v1557 = vpop.f32.mrf.mxu0
    %v1558 = vadd.f32 %v255, %v1557
    %1559 = vdwg.mxu0
    %v1561 = vrot.slane %v1518, 1
    %v1562 = vrot.slane %v1518, 2
    %v1565 = vadd.f32 %v125, %v1561
    %v1566 = vadd.f32 %v128, %v1562
    %v1567 = vxor.u32 %v1565, 2147483648
    %v1568 = vxor.u32 %v1566, 2147483648
    %v1569 = vmul.f32 %v1567, 1.442695
    %v1570 = vpow.pop %v1569
    %v1571 = vmul.f32 %v1568, 1.442695
    %v1572 = vpow.pop %v1571
    %v1573 = vadd.f32 %v1570, 1.0
    %v1574 = vadd.f32 %v1572, 1.0
    %v1575 = vrcp.pop %v1573
    %v1576 = vmul.f32 %v1573, %v1575
    %v1577 = vsub.f32 1.0, %v1576
    %v1578 = vmul.f32 %v1575, %v1577
    %v1579 = vadd.f32 %v1575, %v1578
    %vm1580 = vweird.f32 %v1573
    %vm1581 = vweird.f32 %v1575
    %vm1582 = vmor %vm1580, %vm1581
    %v1583 = vsel %vm1582, %v1575, %v1579
    %v1584 = vand.u32 2147483647, %v1573
    %vm1585 = vcmp.eq.f32.partialorder %v1584, 8.507059e+37
    %v1586 = vand.u32 %v1573, 2147483648
    %v1587 = vor.u32 1.1754944e-38, %v1586
    %v1588 = vsel %vm1585, %v1587, %v1583
    %v1589 = vmul.f32 1.0, %v1588
    %v1590 = vrcp.pop %v1574
    %v1591 = vmul.f32 %v1574, %v1590
    %v1592 = vsub.f32 1.0, %v1591
    %v1593 = vmul.f32 %v1590, %v1592
    %v1594 = vadd.f32 %v1590, %v1593
    %vm1595 = vweird.f32 %v1574
    %vm1596 = vweird.f32 %v1590
    %vm1597 = vmor %vm1595, %vm1596
    %v1598 = vsel %vm1597, %v1590, %v1594
    %v1599 = vand.u32 2147483647, %v1574
    %vm1600 = vcmp.eq.f32.partialorder %v1599, 8.507059e+37
    %v1601 = vand.u32 %v1574, 2147483648
    %v1602 = vor.u32 1.1754944e-38, %v1601
    %v1603 = vsel %vm1600, %v1602, %v1598
    %v1604 = vmul.f32 1.0, %v1603
    %v1606 = vrot.slane %v1538, 1
    %v1607 = vrot.slane %v1538, 2
    %v1610 = vadd.f32 %v158, %v1606
    %v1611 = vadd.f32 %v161, %v1607
    %v1612 = vxor.u32 %v1610, 2147483648
    %v1613 = vxor.u32 %v1611, 2147483648
    %v1614 = vmul.f32 %v1612, 1.442695
    %v1615 = vpow.pop %v1614
    %v1616 = vmul.f32 %v1613, 1.442695
    %v1617 = vpow.pop %v1616
    %v1618 = vadd.f32 %v1615, 1.0
    %v1619 = vadd.f32 %v1617, 1.0
    %v1620 = vrcp.pop %v1618
    %v1621 = vmul.f32 %v1618, %v1620
    %v1622 = vsub.f32 1.0, %v1621
    %v1623 = vmul.f32 %v1620, %v1622
    %v1624 = vadd.f32 %v1620, %v1623
    %vm1625 = vweird.f32 %v1618
    %vm1626 = vweird.f32 %v1620
    %vm1627 = vmor %vm1625, %vm1626
    %v1628 = vsel %vm1627, %v1620, %v1624
    %v1629 = vand.u32 2147483647, %v1618
    %vm1630 = vcmp.eq.f32.partialorder %v1629, 8.507059e+37
    %v1631 = vand.u32 %v1618, 2147483648
    %v1632 = vor.u32 1.1754944e-38, %v1631
    %v1633 = vsel %vm1630, %v1632, %v1628
    %v1634 = vmul.f32 1.0, %v1633
    %v1635 = vrcp.pop %v1619
    %v1636 = vmul.f32 %v1619, %v1635
    %v1637 = vsub.f32 1.0, %v1636
    %v1638 = vmul.f32 %v1635, %v1637
    %v1639 = vadd.f32 %v1635, %v1638
    %vm1640 = vweird.f32 %v1619
    %vm1641 = vweird.f32 %v1635
    %vm1642 = vmor %vm1640, %vm1641
    %v1643 = vsel %vm1642, %v1635, %v1639
    %v1644 = vand.u32 2147483647, %v1619
    %vm1645 = vcmp.eq.f32.partialorder %v1644, 8.507059e+37
    %v1646 = vand.u32 %v1619, 2147483648
    %v1647 = vor.u32 1.1754944e-38, %v1646
    %v1648 = vsel %vm1645, %v1647, %v1643
    %v1649 = vmul.f32 1.0, %v1648
    %v1651 = vrot.slane %v1558, 1
    %v1652 = vrot.slane %v1558, 2
    %v1655 = vmul.f32 %v1589, %v1651
    %v1656 = vmul.f32 %v1604, %v1652
    %v1657 = vadd.f32 %v191, %v1655
    %v1658 = vadd.f32 %v194, %v1656
    %v1659 = vtanh.pop %v1657
    %v1660 = vtanh.pop %v1658
    %v1661 = vsub.f32 1.0, %v1634
    %v1662 = vsub.f32 1.0, %v1649
    %v1663 = vmul.f32 %v1661, %v1659
    %v1664 = vmul.f32 %v1662, %v1660
    %v1665 = vrot.slane %v1486, 7
    %v1666 = vrot.slane %v1487, 7
    %v1669 = vmul.f32 %v1634, %v1665
    %v1670 = vmul.f32 %v1649, %v1666
    %v1671 = vadd.f32 %v1663, %v1669
    %v1672 = vadd.f32 %v1664, %v1670
    %v1673 = vadd.f32 %v1671, %v90
    %v1674 = vadd.f32 %v1672, %v91
    %vm1675 = vcmask 261127
    %1676 = vst.msk [vmem:[#allocation10] sm:$0x80] %vm1675, %v1673
    %1677 = vst.msk [vmem:[#allocation10 + $0x8] sm:$0x80] %vm1675, %v1674
    %v1678 = vld [vmem:[#allocation10] sm:$0xff]
    %v1679 = vld [vmem:[#allocation10 + $0x8] sm:$0xff]
    %v1680 = vsel %vm100, %v1678, 0.0
    %1681 = vadd.xlane.f32.xlu0 %v1680
    %v1682 = vpop.xlane.xlu0 %1681
    %v1683 = vsel %vm100, %v1679, 0.0
    %1684 = vadd.xlane.f32.xlu0 %v1683
    %v1685 = vpop.xlane.xlu0 %1684
    %v1686 = vrcp.pop 32.0
    %v1687 = vmul.f32 32.0, %v1686
    %v1688 = vsub.f32 1.0, %v1687
    %v1689 = vmul.f32 %v1686, %v1688
    %v1690 = vadd.f32 %v1686, %v1689
    %vm1691 = vweird.f32 %v1686
    %v1692 = vsel %vm1691, %v1686, %v1690
    %v1693 = vmul.f32 %v1682, %v1692
    %v1694 = vmul.f32 %v1685, %v1692
    %v1695 = vsub.f32 %v1678, %v1693
    %v1696 = vsub.f32 %v1679, %v1694
    %v1697 = vmul.f32 %v1695, %v1695
    %v1698 = vmul.f32 %v1696, %v1696
    %v1699 = vsel %vm100, %v1697, 0.0
    %1700 = vadd.xlane.f32.xlu0 %v1699
    %v1701 = vpop.xlane.xlu0 %1700
    %v1702 = vsel %vm100, %v1698, 0.0
    %1703 = vadd.xlane.f32.xlu0 %v1702
    %v1704 = vpop.xlane.xlu0 %1703
    %v1705 = vmul.f32 %v1701, %v1692
    %v1706 = vmul.f32 %v1704, %v1692
    %v1707 = vadd.f32 %v1705, 1e-12
    %v1708 = vadd.f32 %v1706, 1e-12
    %v1709 = vrsqrt.pop %v1707
    %v1710 = vmul.f32 %v1709, %v1707
    %v1711 = vmul.f32 %v1710, %v1709
    %v1712 = vmul.f32 0.5, %v1711
    %v1713 = vsub.f32 1.5, %v1712
    %v1714 = vmul.f32 %v1709, %v1713
    %vm1715 = vweird.f32 %v1707
    %vm1716 = vweird.f32 %v1709
    %vm1717 = vmor %vm1715, %vm1716
    %v1718 = vsel %vm1717, %v1709, %v1714
    %v1719 = vrsqrt.pop %v1708
    %v1720 = vmul.f32 %v1719, %v1708
    %v1721 = vmul.f32 %v1720, %v1719
    %v1722 = vmul.f32 0.5, %v1721
    %v1723 = vsub.f32 1.5, %v1722
    %v1724 = vmul.f32 %v1719, %v1723
    %vm1725 = vweird.f32 %v1708
    %vm1726 = vweird.f32 %v1719
    %vm1727 = vmor %vm1725, %vm1726
    %v1728 = vsel %vm1727, %v1719, %v1724
    %v1729 = vmul.f32 %v1695, %v1718
    %v1730 = vmul.f32 %v1696, %v1728
    %v1731 = vld [vmem:[%s5] sm:$0x1]
    %v1733 = vperm.slane %v1731, 0
    %v1735 = vmul.f32 %v1729, %v1733
    %v1736 = vmul.f32 %v1730, %v1733
    %v1737 = vld [vmem:[%s6] sm:$0x1]
    %v1739 = vperm.slane %v1737, 0
    %v1741 = vadd.f32 %v1735, %v1739
    %v1742 = vadd.f32 %v1736, %v1739
    %1743 = vst.msk [vmem:[#allocation10] sm:$0xff] %vm100, %v1741
    %1744 = vst.msk [vmem:[#allocation10 + $0x8] sm:$0xff] %vm100, %v1742
    // Predicated region
    $region46: #{tpu_custom_call.1} parent=1 // pred_check
      _
    $region47: #{tpu_custom_call.1} parent=1 // pred_check_branch
      %1746 = sbr.rel (0) target = $region49
    $region48: #{tpu_custom_call.1} parent=1 // pred_region
      %1748 = vsyncadd [#allocation4], 0
      %s1749 = sshll.u32 [#allocation10], 4
      %s1750 = int_to_ptr.vmem [resolvable:$true] %s1749
      %s1751 = sshll.u32 %s7, 4
      %s1752 = int_to_ptr.hbm [resolvable:$true] %s1751
      %1757 = dma.vmem_to_hbm [thread:$0]  %s1750, 256, %s1752, [#allocation4], 128, 128, 8
    $region49: #{tpu_custom_call.1} parent=1 // pred_fallthru
      _
    // Predicated region
    $region50: #{tpu_custom_call.1} parent=1 // pred_check
      _
    $region51: #{tpu_custom_call.1} parent=1 // pred_check_branch
      %1759 = sbr.rel (0) target = $region53
    $region52: #{tpu_custom_call.1} parent=1 // pred_region
      %1761 = dma.done [#allocation4], 256
    $region53: #{tpu_custom_call.1} parent=1 // pred_fallthru
      _
    %1762 = vsyncpa [#allocation3], 1
    %1763 = vsyncpa [#allocation6], 1
    %1764 = vsyncpa [#allocation9], 1
    %1765 = vsyncpa [#allocation4], 1

</llo_original>
